<compile_context>
chip_gen: v7x
topology: tpu7x:2x2x1
jax: 0.10.0
libtpu: 0.0.40
codegen_flags: <defaults>
</compile_context>

<pallas_src>
import functools

import jax
import jax.numpy as jnp
from jax import lax
from jax.experimental import pallas as pl
from jax.experimental.pallas import tpu as pltpu


def _make_kernel(Bb, tn, chunk_n, N, n_tiles):
    """Build the kernel with all tiling constants closed over (static)."""

    def kernel(x_ref, w1_ref, b1_ref, w2_ref, b2_ref, w3_ref, b3_ref, out_ref):
        # x_ref:  (Bb, C_in, tn)    f32, one point-tile of Bb batches (lanes = points)
        # wK_ref: (C_k, C_{k-1})    f32, BN-folded, transposed conv weights
        # bK_ref: (C_k, 1)          f32, BN-folded biases
        # out_ref:(Bb, C_out, 128)  f32, resident lane-folded running max
        n = pl.program_id(1)

        folded = []
        for b in range(Bb):                        # statically unrolled batch block
            local = None
            for c0 in range(0, tn, chunk_n):       # statically unrolled point chunks
                cw = min(chunk_n, tn - c0)         # static, multiple of 128
                xc = x_ref[b, :, pl.ds(c0, cw)]    # (C_in, cw) f32

                # conv1 + bn1 + relu (1x1 conv == channel matmul, points on lanes)
                h = jnp.dot(w1_ref[...], xc, preferred_element_type=jnp.float32)
                h = jnp.maximum(h + b1_ref[...], 0.0)
                # conv2 + bn2 + relu
                h = jnp.dot(w2_ref[...], h, preferred_element_type=jnp.float32)
                h = jnp.maximum(h + b2_ref[...], 0.0)
                # conv3 + bn3 (no relu)
                h = jnp.dot(w3_ref[...], h, preferred_element_type=jnp.float32)
                h = h + b3_ref[...]                # (C_out, cw) f32

                # Mask point lanes beyond N: the last block reads undefined OOB
                # lanes.  Only emitted for chunks that can actually be OOB
                # (static check); columns are independent, so garbage in OOB
                # lanes never leaks into valid lanes before this select.
                if (n_tiles - 1) * tn + c0 + cw > N:
                    lane = lax.broadcasted_iota(jnp.int32, h.shape, 1)
                    gidx = lane + (n * tn + c0)
                    h = jnp.where(gidx < N, h, -jnp.inf)

                # Fold cw lanes -> 128 lanes with static 128-lane slice maxes
                # (pure elementwise VPU max; no reshape/relayout, no XLU).
                m = h[:, 0:128]
                for g in range(1, cw // 128):
                    m = jnp.maximum(m, h[:, g * 128:(g + 1) * 128])
                local = m if local is None else jnp.maximum(local, m)
            folded.append(local)                   # (C_out, 128) f32

        # First point-tile writes; later tiles read-max-write the resident block.
        @pl.when(n == 0)
        def _():
            for b in range(Bb):
                out_ref[b] = folded[b]

        @pl.when(n != 0)
        def _():
            for b in range(Bb):
                out_ref[b] = jnp.maximum(out_ref[b], folded[b])

    return kernel


def _fold_bn(w, b, gamma, beta, mean, var, eps=1e-5):
    """Fold eval-mode BatchNorm1d into a preceding 1x1 conv.

    w: (C_in, C_out), b: (C_out,)  ->  folded (C_in, C_out), (C_out,)
    """
    scale = gamma / jnp.sqrt(var + eps)            # (C_out,)
    return w * scale[None, :], (b - mean) * scale + beta


def _largest_divisor_leq(n, cap):
    for d in range(min(n, cap), 0, -1):
        if n % d == 0:
            return d
    return 1


@functools.partial(jax.jit, static_argnames=("tile_n", "chunk_n", "batch_block"))
def sim_pointnet_feat(x_ncl, params, tile_n=2048, chunk_n=512, batch_block=8):
    """x_ncl: (B, C_in, N) float32, PyTorch NCL layout.  Returns (B, C_out) f32."""
    B, C_in, N = x_ncl.shape

    # Fold eval-mode BatchNorm into each 1x1 conv.
    w1, b1 = _fold_bn(params["w1"], params["b1"], params["g1"], params["be1"],
                      params["m1"], params["v1"])
    w2, b2 = _fold_bn(params["w2"], params["b2"], params["g2"], params["be2"],
                      params["m2"], params["v2"])
    w3, b3 = _fold_bn(params["w3"], params["b3"], params["g3"], params["be3"],
                      params["m3"], params["v3"])
    C_out = w3.shape[1]

    # channels-first matmul form: (C_out, C_in) @ (C_in, points); all f32.
    w1t, w2t, w3t = w1.T, w2.T, w3.T
    b1 = b1.reshape(-1, 1)
    b2 = b2.reshape(-1, 1)
    b3 = b3.reshape(-1, 1)

    # Static tiling: point-tile per grid step (multiple of 128 lanes, capped at
    # ceil(N/128)*128), in-kernel chunk width, and batch block size (largest
    # divisor of B not exceeding the request, so no batch padding pass).
    n_ceil = -(-N // 128) * 128
    tn = min(max(128, (int(tile_n) // 128) * 128), n_ceil)
    cn = min(max(128, (int(chunk_n) // 128) * 128), tn)
    n_tiles = -(-N // tn)
    Bb = _largest_divisor_leq(B, int(batch_block))

    kernel = _make_kernel(Bb, tn, cn, N, n_tiles)
    w_map = lambda b, n: (0, 0)

    part = pl.pallas_call(
        kernel,
        out_shape=jax.ShapeDtypeStruct((B, C_out, 128), jnp.float32),
        grid_spec=pltpu.PrefetchScalarGridSpec(
            num_scalar_prefetch=0,
            grid=(B // Bb, n_tiles),
            in_specs=[
                pl.BlockSpec((Bb, C_in, tn), lambda b, n: (b, 0, n)),
                pl.BlockSpec(w1t.shape, w_map),
                pl.BlockSpec(b1.shape, w_map),
                pl.BlockSpec(w2t.shape, w_map),
                pl.BlockSpec(b2.shape, w_map),
                pl.BlockSpec(w3t.shape, w_map),
                pl.BlockSpec(b3.shape, w_map),
            ],
            out_specs=pl.BlockSpec((Bb, C_out, 128), lambda b, n: (b, 0, 0)),
        ),
        compiler_params=pltpu.CompilerParams(
            dimension_semantics=("parallel", "arbitrary")),
    )(x_ncl, w1t, b1, w2t, b2, w3t, b3)

    # Tiny lane reduction (B, C_out, 128) -> (B, C_out) in plain XLA.
    return jnp.max(part, axis=-1)


def init_params(key, pts_dim, x_mult=1):
    """Deterministic parameter init matching the module's shapes."""
    c = int(16 * x_mult)
    keys = jax.random.split(key, 12)
    p = {}
    # conv weights stored as (C_in, C_out) (PyTorch Conv1d weight is (C_out,C_in,1))
    p["w1"] = jax.random.normal(keys[0], (pts_dim, c), jnp.float32) * 0.2
    p["b1"] = jax.random.normal(keys[1], (c,), jnp.float32) * 0.05
    p["w2"] = jax.random.normal(keys[2], (c, c), jnp.float32) * 0.2
    p["b2"] = jax.random.normal(keys[3], (c,), jnp.float32) * 0.05
    p["w3"] = jax.random.normal(keys[4], (c, c), jnp.float32) * 0.2
    p["b3"] = jax.random.normal(keys[5], (c,), jnp.float32) * 0.05
    # BatchNorm1d params + running stats (eval-mode semantics)
    for i, k in zip((1, 2, 3), (keys[6], keys[8], keys[10])):
        p[f"g{i}"] = jnp.ones((c,), jnp.float32) + 0.1 * jax.random.normal(k, (c,))
        p[f"be{i}"] = 0.1 * jax.random.normal(jax.random.fold_in(k, 1), (c,))
        p[f"m{i}"] = 0.1 * jax.random.normal(jax.random.fold_in(k, 2), (c,))
        p[f"v{i}"] = jnp.ones((c,), jnp.float32) + 0.05 * jnp.abs(
            jax.random.normal(jax.random.fold_in(k, 3), (c,)))
    return p


def _reference(x_ncl, params):
    """Pure-JAX reference of the eval-mode forward for a sanity check."""
    def bn(h, g, be, m, v, eps=1e-5):  # h: (B, C, N)
        return (h - m[None, :, None]) / jnp.sqrt(v[None, :, None] + eps) \
               * g[None, :, None] + be[None, :, None]

    def conv1x1(h, w, b):  # h: (B, C_in, N), w: (C_in, C_out)
        return jnp.einsum('bcn,cd->bdn', h, w) + b[None, :, None]

    h = jax.nn.relu(bn(conv1x1(x_ncl, params["w1"], params["b1"]),
                       params["g1"], params["be1"], params["m1"], params["v1"]))
    h = jax.nn.relu(bn(conv1x1(h, params["w2"], params["b2"]),
                       params["g2"], params["be2"], params["m2"], params["v2"]))
    h = bn(conv1x1(h, params["w3"], params["b3"]),
           params["g3"], params["be3"], params["m3"], params["v3"])
    return jnp.max(h, axis=2)


if __name__ == "__main__":
    key = jax.random.PRNGKey(0)
    k_x, k_p = jax.random.split(key)

    B, pts_dim, N = 2, 4, 1000   # N deliberately not a multiple of 128 / the tile
    x = jax.random.normal(k_x, (B, pts_dim, N), jnp.float32)
    params = init_params(k_p, pts_dim, x_mult=1)

    ref = _reference(x, params)

    # Default config: large point tile (capped to ceil(N/128)*128), Bb = 2.
    # Exercises the in-kernel tail mask (lanes 1000..1023 are OOB / undefined).
    out = jax.block_until_ready(sim_pointnet_feat(x, params))
    assert out.shape == (B, 16), out.shape
    assert jnp.allclose(out, ref, atol=1e-3, rtol=1e-3), "default config mismatch"

    # Small-tile config: exercises multi-tile running max accumulation,
    # per-chunk folding, and the tail mask in the last tile with Bb = 1.
    out_small = jax.block_until_ready(
        sim_pointnet_feat(x, params, tile_n=256, chunk_n=128, batch_block=1))
    assert out_small.shape == (B, 16), out_small.shape
    assert jnp.allclose(out_small, ref, atol=1e-3, rtol=1e-3), "small-tile mismatch"

    print("KERNEL_OK")
</pallas_src>

<mosaic_0001>
module attributes {stable_mosaic.version = 11 : i64} {
  func.func @kernel(%arg0: i32, %arg1: i32, %arg2: memref<2x4x1024xf32, #tpu.memory_space<vmem>>, %arg3: memref<16x4xf32, #tpu.memory_space<vmem>>, %arg4: memref<16x1xf32, #tpu.memory_space<vmem>>, %arg5: memref<16x16xf32, #tpu.memory_space<vmem>>, %arg6: memref<16x1xf32, #tpu.memory_space<vmem>>, %arg7: memref<16x16xf32, #tpu.memory_space<vmem>>, %arg8: memref<16x1xf32, #tpu.memory_space<vmem>>, %arg9: memref<2x16x128xf32, #tpu.memory_space<vmem>>) attributes {dimension_semantics = [#tpu.dimension_semantics<parallel>, #tpu.dimension_semantics<arbitrary>], iteration_bounds = array<i64: 1, 1>, scalar_prefetch = 0 : i64, scratch_operands = 0 : i64, tpu.core_type = #tpu.core_type<tc>, window_params = [{transform_indices = @transform_0, window_bounds = array<i64: 2, 4, 1024>}, {pipeline_mode = #tpu.pipeline_mode<synchronous>, transform_indices = @transform_1, window_bounds = array<i64: 16, 4>}, {pipeline_mode = #tpu.pipeline_mode<synchronous>, transform_indices = @transform_2, window_bounds = array<i64: 16, 1>}, {pipeline_mode = #tpu.pipeline_mode<synchronous>, transform_indices = @transform_3, window_bounds = array<i64: 16, 16>}, {pipeline_mode = #tpu.pipeline_mode<synchronous>, transform_indices = @transform_4, window_bounds = array<i64: 16, 1>}, {pipeline_mode = #tpu.pipeline_mode<synchronous>, transform_indices = @transform_5, window_bounds = array<i64: 16, 16>}, {pipeline_mode = #tpu.pipeline_mode<synchronous>, transform_indices = @transform_6, window_bounds = array<i64: 16, 1>}, {transform_indices = @transform_7, window_bounds = array<i64: 2, 16, 128>}]} {
    %c0 = arith.constant 0 : index
    %c0_0 = arith.constant 0 : index
    %c0_1 = arith.constant 0 : index
    %0 = vector.load %arg2[%c0, %c0_0, %c0_1] : memref<2x4x1024xf32, #tpu.memory_space<vmem>>, vector<1x4x512xf32>
    %1 = vector.shape_cast %0 : vector<1x4x512xf32> to vector<4x512xf32>
    %c0_2 = arith.constant 0 : index
    %c0_3 = arith.constant 0 : index
    %2 = vector.load %arg3[%c0_2, %c0_3] : memref<16x4xf32, #tpu.memory_space<vmem>>, vector<16x4xf32>
    %cst = arith.constant dense<0.000000e+00> : vector<16x512xf32>
    %3 = tpu.matmul %2, %1, %cst {dimension_numbers = #tpu.dot_dimension_numbers<[1], [0], [0], [1], [0, 0, 1, 1], [], []>} : vector<16x4xf32>, vector<4x512xf32>, vector<16x512xf32> -> vector<16x512xf32>
    %c0_4 = arith.constant 0 : index
    %c0_5 = arith.constant 0 : index
    %4 = vector.load %arg4[%c0_4, %c0_5] : memref<16x1xf32, #tpu.memory_space<vmem>>, vector<16x1xf32>
    %5 = vector.broadcast %4 : vector<16x1xf32> to vector<16x512xf32>
    %6 = arith.addf %3, %5 : vector<16x512xf32>
    %cst_6 = arith.constant 0.000000e+00 : f32
    %7 = vector.broadcast %cst_6 : f32 to vector<16x512xf32>
    %8 = arith.maximumf %6, %7 : vector<16x512xf32>
    %c0_7 = arith.constant 0 : index
    %c0_8 = arith.constant 0 : index
    %9 = vector.load %arg5[%c0_7, %c0_8] : memref<16x16xf32, #tpu.memory_space<vmem>>, vector<16x16xf32>
    %cst_9 = arith.constant dense<0.000000e+00> : vector<16x512xf32>
    %10 = tpu.matmul %9, %8, %cst_9 {dimension_numbers = #tpu.dot_dimension_numbers<[1], [0], [0], [1], [0, 0, 1, 1], [], []>} : vector<16x16xf32>, vector<16x512xf32>, vector<16x512xf32> -> vector<16x512xf32>
    %c0_10 = arith.constant 0 : index
    %c0_11 = arith.constant 0 : index
    %11 = vector.load %arg6[%c0_10, %c0_11] : memref<16x1xf32, #tpu.memory_space<vmem>>, vector<16x1xf32>
    %12 = vector.broadcast %11 : vector<16x1xf32> to vector<16x512xf32>
    %13 = arith.addf %10, %12 : vector<16x512xf32>
    %cst_12 = arith.constant 0.000000e+00 : f32
    %14 = vector.broadcast %cst_12 : f32 to vector<16x512xf32>
    %15 = arith.maximumf %13, %14 : vector<16x512xf32>
    %c0_13 = arith.constant 0 : index
    %c0_14 = arith.constant 0 : index
    %16 = vector.load %arg7[%c0_13, %c0_14] : memref<16x16xf32, #tpu.memory_space<vmem>>, vector<16x16xf32>
    %cst_15 = arith.constant dense<0.000000e+00> : vector<16x512xf32>
    %17 = tpu.matmul %16, %15, %cst_15 {dimension_numbers = #tpu.dot_dimension_numbers<[1], [0], [0], [1], [0, 0, 1, 1], [], []>} : vector<16x16xf32>, vector<16x512xf32>, vector<16x512xf32> -> vector<16x512xf32>
    %c0_16 = arith.constant 0 : index
    %c0_17 = arith.constant 0 : index
    %18 = vector.load %arg8[%c0_16, %c0_17] : memref<16x1xf32, #tpu.memory_space<vmem>>, vector<16x1xf32>
    %19 = vector.broadcast %18 : vector<16x1xf32> to vector<16x512xf32>
    %20 = arith.addf %17, %19 : vector<16x512xf32>
    %21 = vector.extract_strided_slice %20 {offsets = [0, 0], sizes = [16, 128], strides = [1, 1]} : vector<16x512xf32> to vector<16x128xf32>
    %22 = vector.extract_strided_slice %20 {offsets = [0, 128], sizes = [16, 128], strides = [1, 1]} : vector<16x512xf32> to vector<16x128xf32>
    %23 = arith.maximumf %21, %22 : vector<16x128xf32>
    %24 = vector.extract_strided_slice %20 {offsets = [0, 256], sizes = [16, 128], strides = [1, 1]} : vector<16x512xf32> to vector<16x128xf32>
    %25 = arith.maximumf %23, %24 : vector<16x128xf32>
    %26 = vector.extract_strided_slice %20 {offsets = [0, 384], sizes = [16, 128], strides = [1, 1]} : vector<16x512xf32> to vector<16x128xf32>
    %27 = arith.maximumf %25, %26 : vector<16x128xf32>
    %c0_18 = arith.constant 0 : index
    %c0_19 = arith.constant 0 : index
    %c512 = arith.constant 512 : index
    %28 = vector.load %arg2[%c0_18, %c0_19, %c512] : memref<2x4x1024xf32, #tpu.memory_space<vmem>>, vector<1x4x512xf32>
    %29 = vector.shape_cast %28 : vector<1x4x512xf32> to vector<4x512xf32>
    %c0_20 = arith.constant 0 : index
    %c0_21 = arith.constant 0 : index
    %30 = vector.load %arg3[%c0_20, %c0_21] : memref<16x4xf32, #tpu.memory_space<vmem>>, vector<16x4xf32>
    %cst_22 = arith.constant dense<0.000000e+00> : vector<16x512xf32>
    %31 = tpu.matmul %30, %29, %cst_22 {dimension_numbers = #tpu.dot_dimension_numbers<[1], [0], [0], [1], [0, 0, 1, 1], [], []>} : vector<16x4xf32>, vector<4x512xf32>, vector<16x512xf32> -> vector<16x512xf32>
    %c0_23 = arith.constant 0 : index
    %c0_24 = arith.constant 0 : index
    %32 = vector.load %arg4[%c0_23, %c0_24] : memref<16x1xf32, #tpu.memory_space<vmem>>, vector<16x1xf32>
    %33 = vector.broadcast %32 : vector<16x1xf32> to vector<16x512xf32>
    %34 = arith.addf %31, %33 : vector<16x512xf32>
    %cst_25 = arith.constant 0.000000e+00 : f32
    %35 = vector.broadcast %cst_25 : f32 to vector<16x512xf32>
    %36 = arith.maximumf %34, %35 : vector<16x512xf32>
    %c0_26 = arith.constant 0 : index
    %c0_27 = arith.constant 0 : index
    %37 = vector.load %arg5[%c0_26, %c0_27] : memref<16x16xf32, #tpu.memory_space<vmem>>, vector<16x16xf32>
    %cst_28 = arith.constant dense<0.000000e+00> : vector<16x512xf32>
    %38 = tpu.matmul %37, %36, %cst_28 {dimension_numbers = #tpu.dot_dimension_numbers<[1], [0], [0], [1], [0, 0, 1, 1], [], []>} : vector<16x16xf32>, vector<16x512xf32>, vector<16x512xf32> -> vector<16x512xf32>
    %c0_29 = arith.constant 0 : index
    %c0_30 = arith.constant 0 : index
    %39 = vector.load %arg6[%c0_29, %c0_30] : memref<16x1xf32, #tpu.memory_space<vmem>>, vector<16x1xf32>
    %40 = vector.broadcast %39 : vector<16x1xf32> to vector<16x512xf32>
    %41 = arith.addf %38, %40 : vector<16x512xf32>
    %cst_31 = arith.constant 0.000000e+00 : f32
    %42 = vector.broadcast %cst_31 : f32 to vector<16x512xf32>
    %43 = arith.maximumf %41, %42 : vector<16x512xf32>
    %c0_32 = arith.constant 0 : index
    %c0_33 = arith.constant 0 : index
    %44 = vector.load %arg7[%c0_32, %c0_33] : memref<16x16xf32, #tpu.memory_space<vmem>>, vector<16x16xf32>
    %cst_34 = arith.constant dense<0.000000e+00> : vector<16x512xf32>
    %45 = tpu.matmul %44, %43, %cst_34 {dimension_numbers = #tpu.dot_dimension_numbers<[1], [0], [0], [1], [0, 0, 1, 1], [], []>} : vector<16x16xf32>, vector<16x512xf32>, vector<16x512xf32> -> vector<16x512xf32>
    %c0_35 = arith.constant 0 : index
    %c0_36 = arith.constant 0 : index
    %46 = vector.load %arg8[%c0_35, %c0_36] : memref<16x1xf32, #tpu.memory_space<vmem>>, vector<16x1xf32>
    %47 = vector.broadcast %46 : vector<16x1xf32> to vector<16x512xf32>
    %48 = arith.addf %45, %47 : vector<16x512xf32>
    %49 = tpu.iota {dimensions = array<i32: 1>} : vector<16x512xi32>
    %c1024_i32 = arith.constant 1024 : i32
    %50 = arith.muli %arg1, %c1024_i32 : i32
    %c512_i32 = arith.constant 512 : i32
    %51 = arith.addi %50, %c512_i32 : i32
    %52 = vector.broadcast %51 : i32 to vector<16x512xi32>
    %53 = arith.addi %49, %52 : vector<16x512xi32>
    %c1000_i32 = arith.constant 1000 : i32
    %54 = vector.broadcast %c1000_i32 : i32 to vector<16x512xi32>
    %55 = arith.cmpi slt, %53, %54 : vector<16x512xi32>
    %cst_37 = arith.constant 0xFF800000 : f32
    %56 = vector.broadcast %cst_37 : f32 to vector<16x512xf32>
    %57 = arith.select %55, %48, %56 : vector<16x512xi1>, vector<16x512xf32>
    %58 = vector.extract_strided_slice %57 {offsets = [0, 0], sizes = [16, 128], strides = [1, 1]} : vector<16x512xf32> to vector<16x128xf32>
    %59 = vector.extract_strided_slice %57 {offsets = [0, 128], sizes = [16, 128], strides = [1, 1]} : vector<16x512xf32> to vector<16x128xf32>
    %60 = arith.maximumf %58, %59 : vector<16x128xf32>
    %61 = vector.extract_strided_slice %57 {offsets = [0, 256], sizes = [16, 128], strides = [1, 1]} : vector<16x512xf32> to vector<16x128xf32>
    %62 = arith.maximumf %60, %61 : vector<16x128xf32>
    %63 = vector.extract_strided_slice %57 {offsets = [0, 384], sizes = [16, 128], strides = [1, 1]} : vector<16x512xf32> to vector<16x128xf32>
    %64 = arith.maximumf %62, %63 : vector<16x128xf32>
    %65 = arith.maximumf %27, %64 : vector<16x128xf32>
    %c1 = arith.constant 1 : index
    %c0_38 = arith.constant 0 : index
    %c0_39 = arith.constant 0 : index
    %66 = vector.load %arg2[%c1, %c0_38, %c0_39] : memref<2x4x1024xf32, #tpu.memory_space<vmem>>, vector<1x4x512xf32>
    %67 = vector.shape_cast %66 : vector<1x4x512xf32> to vector<4x512xf32>
    %c0_40 = arith.constant 0 : index
    %c0_41 = arith.constant 0 : index
    %68 = vector.load %arg3[%c0_40, %c0_41] : memref<16x4xf32, #tpu.memory_space<vmem>>, vector<16x4xf32>
    %cst_42 = arith.constant dense<0.000000e+00> : vector<16x512xf32>
    %69 = tpu.matmul %68, %67, %cst_42 {dimension_numbers = #tpu.dot_dimension_numbers<[1], [0], [0], [1], [0, 0, 1, 1], [], []>} : vector<16x4xf32>, vector<4x512xf32>, vector<16x512xf32> -> vector<16x512xf32>
    %c0_43 = arith.constant 0 : index
    %c0_44 = arith.constant 0 : index
    %70 = vector.load %arg4[%c0_43, %c0_44] : memref<16x1xf32, #tpu.memory_space<vmem>>, vector<16x1xf32>
    %71 = vector.broadcast %70 : vector<16x1xf32> to vector<16x512xf32>
    %72 = arith.addf %69, %71 : vector<16x512xf32>
    %cst_45 = arith.constant 0.000000e+00 : f32
    %73 = vector.broadcast %cst_45 : f32 to vector<16x512xf32>
    %74 = arith.maximumf %72, %73 : vector<16x512xf32>
    %c0_46 = arith.constant 0 : index
    %c0_47 = arith.constant 0 : index
    %75 = vector.load %arg5[%c0_46, %c0_47] : memref<16x16xf32, #tpu.memory_space<vmem>>, vector<16x16xf32>
    %cst_48 = arith.constant dense<0.000000e+00> : vector<16x512xf32>
    %76 = tpu.matmul %75, %74, %cst_48 {dimension_numbers = #tpu.dot_dimension_numbers<[1], [0], [0], [1], [0, 0, 1, 1], [], []>} : vector<16x16xf32>, vector<16x512xf32>, vector<16x512xf32> -> vector<16x512xf32>
    %c0_49 = arith.constant 0 : index
    %c0_50 = arith.constant 0 : index
    %77 = vector.load %arg6[%c0_49, %c0_50] : memref<16x1xf32, #tpu.memory_space<vmem>>, vector<16x1xf32>
    %78 = vector.broadcast %77 : vector<16x1xf32> to vector<16x512xf32>
    %79 = arith.addf %76, %78 : vector<16x512xf32>
    %cst_51 = arith.constant 0.000000e+00 : f32
    %80 = vector.broadcast %cst_51 : f32 to vector<16x512xf32>
    %81 = arith.maximumf %79, %80 : vector<16x512xf32>
    %c0_52 = arith.constant 0 : index
    %c0_53 = arith.constant 0 : index
    %82 = vector.load %arg7[%c0_52, %c0_53] : memref<16x16xf32, #tpu.memory_space<vmem>>, vector<16x16xf32>
    %cst_54 = arith.constant dense<0.000000e+00> : vector<16x512xf32>
    %83 = tpu.matmul %82, %81, %cst_54 {dimension_numbers = #tpu.dot_dimension_numbers<[1], [0], [0], [1], [0, 0, 1, 1], [], []>} : vector<16x16xf32>, vector<16x512xf32>, vector<16x512xf32> -> vector<16x512xf32>
    %c0_55 = arith.constant 0 : index
    %c0_56 = arith.constant 0 : index
    %84 = vector.load %arg8[%c0_55, %c0_56] : memref<16x1xf32, #tpu.memory_space<vmem>>, vector<16x1xf32>
    %85 = vector.broadcast %84 : vector<16x1xf32> to vector<16x512xf32>
    %86 = arith.addf %83, %85 : vector<16x512xf32>
    %87 = vector.extract_strided_slice %86 {offsets = [0, 0], sizes = [16, 128], strides = [1, 1]} : vector<16x512xf32> to vector<16x128xf32>
    %88 = vector.extract_strided_slice %86 {offsets = [0, 128], sizes = [16, 128], strides = [1, 1]} : vector<16x512xf32> to vector<16x128xf32>
    %89 = arith.maximumf %87, %88 : vector<16x128xf32>
    %90 = vector.extract_strided_slice %86 {offsets = [0, 256], sizes = [16, 128], strides = [1, 1]} : vector<16x512xf32> to vector<16x128xf32>
    %91 = arith.maximumf %89, %90 : vector<16x128xf32>
    %92 = vector.extract_strided_slice %86 {offsets = [0, 384], sizes = [16, 128], strides = [1, 1]} : vector<16x512xf32> to vector<16x128xf32>
    %93 = arith.maximumf %91, %92 : vector<16x128xf32>
    %c1_57 = arith.constant 1 : index
    %c0_58 = arith.constant 0 : index
    %c512_59 = arith.constant 512 : index
    %94 = vector.load %arg2[%c1_57, %c0_58, %c512_59] : memref<2x4x1024xf32, #tpu.memory_space<vmem>>, vector<1x4x512xf32>
    %95 = vector.shape_cast %94 : vector<1x4x512xf32> to vector<4x512xf32>
    %c0_60 = arith.constant 0 : index
    %c0_61 = arith.constant 0 : index
    %96 = vector.load %arg3[%c0_60, %c0_61] : memref<16x4xf32, #tpu.memory_space<vmem>>, vector<16x4xf32>
    %cst_62 = arith.constant dense<0.000000e+00> : vector<16x512xf32>
    %97 = tpu.matmul %96, %95, %cst_62 {dimension_numbers = #tpu.dot_dimension_numbers<[1], [0], [0], [1], [0, 0, 1, 1], [], []>} : vector<16x4xf32>, vector<4x512xf32>, vector<16x512xf32> -> vector<16x512xf32>
    %c0_63 = arith.constant 0 : index
    %c0_64 = arith.constant 0 : index
    %98 = vector.load %arg4[%c0_63, %c0_64] : memref<16x1xf32, #tpu.memory_space<vmem>>, vector<16x1xf32>
    %99 = vector.broadcast %98 : vector<16x1xf32> to vector<16x512xf32>
    %100 = arith.addf %97, %99 : vector<16x512xf32>
    %cst_65 = arith.constant 0.000000e+00 : f32
    %101 = vector.broadcast %cst_65 : f32 to vector<16x512xf32>
    %102 = arith.maximumf %100, %101 : vector<16x512xf32>
    %c0_66 = arith.constant 0 : index
    %c0_67 = arith.constant 0 : index
    %103 = vector.load %arg5[%c0_66, %c0_67] : memref<16x16xf32, #tpu.memory_space<vmem>>, vector<16x16xf32>
    %cst_68 = arith.constant dense<0.000000e+00> : vector<16x512xf32>
    %104 = tpu.matmul %103, %102, %cst_68 {dimension_numbers = #tpu.dot_dimension_numbers<[1], [0], [0], [1], [0, 0, 1, 1], [], []>} : vector<16x16xf32>, vector<16x512xf32>, vector<16x512xf32> -> vector<16x512xf32>
    %c0_69 = arith.constant 0 : index
    %c0_70 = arith.constant 0 : index
    %105 = vector.load %arg6[%c0_69, %c0_70] : memref<16x1xf32, #tpu.memory_space<vmem>>, vector<16x1xf32>
    %106 = vector.broadcast %105 : vector<16x1xf32> to vector<16x512xf32>
    %107 = arith.addf %104, %106 : vector<16x512xf32>
    %cst_71 = arith.constant 0.000000e+00 : f32
    %108 = vector.broadcast %cst_71 : f32 to vector<16x512xf32>
    %109 = arith.maximumf %107, %108 : vector<16x512xf32>
    %c0_72 = arith.constant 0 : index
    %c0_73 = arith.constant 0 : index
    %110 = vector.load %arg7[%c0_72, %c0_73] : memref<16x16xf32, #tpu.memory_space<vmem>>, vector<16x16xf32>
    %cst_74 = arith.constant dense<0.000000e+00> : vector<16x512xf32>
    %111 = tpu.matmul %110, %109, %cst_74 {dimension_numbers = #tpu.dot_dimension_numbers<[1], [0], [0], [1], [0, 0, 1, 1], [], []>} : vector<16x16xf32>, vector<16x512xf32>, vector<16x512xf32> -> vector<16x512xf32>
    %c0_75 = arith.constant 0 : index
    %c0_76 = arith.constant 0 : index
    %112 = vector.load %arg8[%c0_75, %c0_76] : memref<16x1xf32, #tpu.memory_space<vmem>>, vector<16x1xf32>
    %113 = vector.broadcast %112 : vector<16x1xf32> to vector<16x512xf32>
    %114 = arith.addf %111, %113 : vector<16x512xf32>
    %115 = tpu.iota {dimensions = array<i32: 1>} : vector<16x512xi32>
    %c1024_i32_77 = arith.constant 1024 : i32
    %116 = arith.muli %arg1, %c1024_i32_77 : i32
    %c512_i32_78 = arith.constant 512 : i32
    %117 = arith.addi %116, %c512_i32_78 : i32
    %118 = vector.broadcast %117 : i32 to vector<16x512xi32>
    %119 = arith.addi %115, %118 : vector<16x512xi32>
    %c1000_i32_79 = arith.constant 1000 : i32
    %120 = vector.broadcast %c1000_i32_79 : i32 to vector<16x512xi32>
    %121 = arith.cmpi slt, %119, %120 : vector<16x512xi32>
    %cst_80 = arith.constant 0xFF800000 : f32
    %122 = vector.broadcast %cst_80 : f32 to vector<16x512xf32>
    %123 = arith.select %121, %114, %122 : vector<16x512xi1>, vector<16x512xf32>
    %124 = vector.extract_strided_slice %123 {offsets = [0, 0], sizes = [16, 128], strides = [1, 1]} : vector<16x512xf32> to vector<16x128xf32>
    %125 = vector.extract_strided_slice %123 {offsets = [0, 128], sizes = [16, 128], strides = [1, 1]} : vector<16x512xf32> to vector<16x128xf32>
    %126 = arith.maximumf %124, %125 : vector<16x128xf32>
    %127 = vector.extract_strided_slice %123 {offsets = [0, 256], sizes = [16, 128], strides = [1, 1]} : vector<16x512xf32> to vector<16x128xf32>
    %128 = arith.maximumf %126, %127 : vector<16x128xf32>
    %129 = vector.extract_strided_slice %123 {offsets = [0, 384], sizes = [16, 128], strides = [1, 1]} : vector<16x512xf32> to vector<16x128xf32>
    %130 = arith.maximumf %128, %129 : vector<16x128xf32>
    %131 = arith.maximumf %93, %130 : vector<16x128xf32>
    %c0_i32 = arith.constant 0 : i32
    %132 = arith.cmpi eq, %arg1, %c0_i32 : i32
    %133 = arith.extui %132 : i1 to i32
    %c0_i32_81 = arith.constant 0 : i32
    %134 = arith.cmpi ne, %133, %c0_i32_81 : i32
    scf.if %134 {
      %c0_84 = arith.constant 0 : index
      %c0_85 = arith.constant 0 : index
      %c0_86 = arith.constant 0 : index
      %138 = vector.load %arg9[%c0_84, %c0_85, %c0_86] : memref<2x16x128xf32, #tpu.memory_space<vmem>>, vector<1x16x128xf32>
      %139 = vector.shape_cast %138 : vector<1x16x128xf32> to vector<16x128xf32>
      %140 = vector.shape_cast %65 : vector<16x128xf32> to vector<1x16x128xf32>
      tpu.vector_store %arg9[%c0_84, %c0_85, %c0_86], %140 {strides = array<i32>} : memref<2x16x128xf32, #tpu.memory_space<vmem>>, vector<1x16x128xf32>,
      %c1_87 = arith.constant 1 : index
      %c0_88 = arith.constant 0 : index
      %c0_89 = arith.constant 0 : index
      %141 = vector.load %arg9[%c1_87, %c0_88, %c0_89] : memref<2x16x128xf32, #tpu.memory_space<vmem>>, vector<1x16x128xf32>
      %142 = vector.shape_cast %141 : vector<1x16x128xf32> to vector<16x128xf32>
      %143 = vector.shape_cast %131 : vector<16x128xf32> to vector<1x16x128xf32>
      tpu.vector_store %arg9[%c1_87, %c0_88, %c0_89], %143 {strides = array<i32>} : memref<2x16x128xf32, #tpu.memory_space<vmem>>, vector<1x16x128xf32>,
    } else {
    }
    %c0_i32_82 = arith.constant 0 : i32
    %135 = arith.cmpi ne, %arg1, %c0_i32_82 : i32
    %136 = arith.extui %135 : i1 to i32
    %c0_i32_83 = arith.constant 0 : i32
    %137 = arith.cmpi ne, %136, %c0_i32_83 : i32
    scf.if %137 {
      %c0_84 = arith.constant 0 : index
      %c0_85 = arith.constant 0 : index
      %c0_86 = arith.constant 0 : index
      %138 = vector.load %arg9[%c0_84, %c0_85, %c0_86] : memref<2x16x128xf32, #tpu.memory_space<vmem>>, vector<1x16x128xf32>
      %139 = vector.shape_cast %138 : vector<1x16x128xf32> to vector<16x128xf32>
      %140 = arith.maximumf %139, %65 : vector<16x128xf32>
      %c0_87 = arith.constant 0 : index
      %c0_88 = arith.constant 0 : index
      %c0_89 = arith.constant 0 : index
      %141 = vector.load %arg9[%c0_87, %c0_88, %c0_89] : memref<2x16x128xf32, #tpu.memory_space<vmem>>, vector<1x16x128xf32>
      %142 = vector.shape_cast %141 : vector<1x16x128xf32> to vector<16x128xf32>
      %143 = vector.shape_cast %140 : vector<16x128xf32> to vector<1x16x128xf32>
      tpu.vector_store %arg9[%c0_87, %c0_88, %c0_89], %143 {strides = array<i32>} : memref<2x16x128xf32, #tpu.memory_space<vmem>>, vector<1x16x128xf32>,
      %c1_90 = arith.constant 1 : index
      %c0_91 = arith.constant 0 : index
      %c0_92 = arith.constant 0 : index
      %144 = vector.load %arg9[%c1_90, %c0_91, %c0_92] : memref<2x16x128xf32, #tpu.memory_space<vmem>>, vector<1x16x128xf32>
      %145 = vector.shape_cast %144 : vector<1x16x128xf32> to vector<16x128xf32>
      %146 = arith.maximumf %145, %131 : vector<16x128xf32>
      %c1_93 = arith.constant 1 : index
      %c0_94 = arith.constant 0 : index
      %c0_95 = arith.constant 0 : index
      %147 = vector.load %arg9[%c1_93, %c0_94, %c0_95] : memref<2x16x128xf32, #tpu.memory_space<vmem>>, vector<1x16x128xf32>
      %148 = vector.shape_cast %147 : vector<1x16x128xf32> to vector<16x128xf32>
      %149 = vector.shape_cast %146 : vector<16x128xf32> to vector<1x16x128xf32>
      tpu.vector_store %arg9[%c1_93, %c0_94, %c0_95], %149 {strides = array<i32>} : memref<2x16x128xf32, #tpu.memory_space<vmem>>, vector<1x16x128xf32>,
    } else {
    }
    return
  }
  func.func @transform_0(%arg0: i32, %arg1: i32) -> (i32, i32, i32) {
    %c0_i32 = arith.constant 0 : i32
    %c0_i32_0 = arith.constant 0 : i32
    return %arg0, %c0_i32, %arg1 : i32, i32, i32
  }
  func.func @transform_1(%arg0: i32, %arg1: i32) -> (i32, i32) {
    %c0_i32 = arith.constant 0 : i32
    %c0_i32_0 = arith.constant 0 : i32
    %c0_i32_1 = arith.constant 0 : i32
    return %c0_i32, %c0_i32_0 : i32, i32
  }
  func.func @transform_2(%arg0: i32, %arg1: i32) -> (i32, i32) {
    %c0_i32 = arith.constant 0 : i32
    %c0_i32_0 = arith.constant 0 : i32
    %c0_i32_1 = arith.constant 0 : i32
    return %c0_i32, %c0_i32_0 : i32, i32
  }
  func.func @transform_3(%arg0: i32, %arg1: i32) -> (i32, i32) {
    %c0_i32 = arith.constant 0 : i32
    %c0_i32_0 = arith.constant 0 : i32
    %c0_i32_1 = arith.constant 0 : i32
    return %c0_i32, %c0_i32_0 : i32, i32
  }
  func.func @transform_4(%arg0: i32, %arg1: i32) -> (i32, i32) {
    %c0_i32 = arith.constant 0 : i32
    %c0_i32_0 = arith.constant 0 : i32
    %c0_i32_1 = arith.constant 0 : i32
    return %c0_i32, %c0_i32_0 : i32, i32
  }
  func.func @transform_5(%arg0: i32, %arg1: i32) -> (i32, i32) {
    %c0_i32 = arith.constant 0 : i32
    %c0_i32_0 = arith.constant 0 : i32
    %c0_i32_1 = arith.constant 0 : i32
    return %c0_i32, %c0_i32_0 : i32, i32
  }
  func.func @transform_6(%arg0: i32, %arg1: i32) -> (i32, i32) {
    %c0_i32 = arith.constant 0 : i32
    %c0_i32_0 = arith.constant 0 : i32
    %c0_i32_1 = arith.constant 0 : i32
    return %c0_i32, %c0_i32_0 : i32, i32
  }
  func.func @transform_7(%arg0: i32, %arg1: i32) -> (i32, i32, i32) {
    %c0_i32 = arith.constant 0 : i32
    %c0_i32_0 = arith.constant 0 : i32
    %c0_i32_1 = arith.constant 0 : i32
    return %arg0, %c0_i32, %c0_i32_0 : i32, i32, i32
  }
}

</mosaic_0001>

<llo_original>
// kernel: sim_pointnet_feat.1
$region0: #{sim_pointnet_feat.1}
  #allocation0 [shape = 'u32[]', space=smem, size = 0x4, offset = 0x4, fixed_abs, tag = 'smem constant byte address 0x4 - core index']
  #allocation1 [shape = 'u32[144,128]{1,0:T(1,128)}', space=vmem, size = 0x12000, scoped, tag = 'internal scratch']
  %s0 = inlined_call_operand.vmem [shape: f32[2,4,1000], index: 0, kind: input, shape index: {}]
  %s1 = inlined_call_operand.vmem [shape: f32[16,4], index: 1, kind: input, shape index: {}]
  %s2 = inlined_call_operand.vmem [shape: f32[16,1], index: 2, kind: input, shape index: {}]
  %s3 = inlined_call_operand.vmem [shape: f32[16,16], index: 3, kind: input, shape index: {}]
  %s4 = inlined_call_operand.vmem [shape: f32[16,1], index: 4, kind: input, shape index: {}]
  %s5 = inlined_call_operand.vmem [shape: f32[16,16], index: 5, kind: input, shape index: {}]
  %s6 = inlined_call_operand.vmem [shape: f32[16,1], index: 6, kind: input, shape index: {}]
  %s7 = inlined_call_operand.vmem [shape: f32[2,16,128], index: 7, kind: output, shape index: {}]
  %s8 = sld [smem:[#allocation0]]
  $region46: #{sim_pointnet_feat.1} parent=0
    _
  %s10 = ssub.s32 1, %s8
  %s11 = scalar_select 0, %s10, %s8
  // Predicated region
  $region2: #{sim_pointnet_feat.1} parent=0 // pred_check
    _
  $region3: #{sim_pointnet_feat.1} parent=0 // pred_check_branch
    %13 = sbr.rel (0) target = $region5
  $region4: #{sim_pointnet_feat.1} parent=0 // pred_region
    _
  $region5: #{sim_pointnet_feat.1} parent=0 // pred_fallthru
    _
  // Predicated region
  $region6: #{sim_pointnet_feat.1} parent=0 // pred_check
    _
  $region7: #{sim_pointnet_feat.1} parent=0 // pred_check_branch
    %15 = sbr.rel (0) target = $region9
  $region8: #{sim_pointnet_feat.1} parent=0 // pred_region
    _
  $region9: #{sim_pointnet_feat.1} parent=0 // pred_fallthru
    _
  // Predicated region
  $region10: #{sim_pointnet_feat.1} parent=0 // pred_check
    _
  $region11: #{sim_pointnet_feat.1} parent=0 // pred_check_branch
    %17 = sbr.rel (0) target = $region13
  $region12: #{sim_pointnet_feat.1} parent=0 // pred_region
    _
  $region13: #{sim_pointnet_feat.1} parent=0 // pred_fallthru
    _
  // Predicated region
  $region14: #{sim_pointnet_feat.1} parent=0 // pred_check
    _
  $region15: #{sim_pointnet_feat.1} parent=0 // pred_check_branch
    %19 = sbr.rel (0) target = $region17
  $region16: #{sim_pointnet_feat.1} parent=0 // pred_region
    _
  $region17: #{sim_pointnet_feat.1} parent=0 // pred_fallthru
    _
  // Predicated region
  $region18: #{sim_pointnet_feat.1} parent=0 // pred_check
    _
  $region19: #{sim_pointnet_feat.1} parent=0 // pred_check_branch
    %21 = sbr.rel (0) target = $region21
  $region20: #{sim_pointnet_feat.1} parent=0 // pred_region
    _
  $region21: #{sim_pointnet_feat.1} parent=0 // pred_fallthru
    _
  // Predicated region
  $region22: #{sim_pointnet_feat.1} parent=0 // pred_check
    _
  $region23: #{sim_pointnet_feat.1} parent=0 // pred_check_branch
    %23 = sbr.rel (0) target = $region25
  $region24: #{sim_pointnet_feat.1} parent=0 // pred_region
    _
  $region25: #{sim_pointnet_feat.1} parent=0 // pred_fallthru
    _
  // Predicated region
  $region26: #{sim_pointnet_feat.1} parent=0 // pred_check
    _
  $region27: #{sim_pointnet_feat.1} parent=0 // pred_check_branch
    %25 = sbr.rel (0) target = $region29
  $region28: #{sim_pointnet_feat.1} parent=0 // pred_region
    _
  $region29: #{sim_pointnet_feat.1} parent=0 // pred_fallthru
    _
  %v26 = vld [vmem:[%s0] sm:$0xff]
  %v27 = vld [vmem:[%s0 + $0x8] sm:$0xff]
  %v28 = vld [vmem:[%s1] sm:$0xff]
  %v29 = vld [vmem:[%s1 + $0x8] sm:$0xff]
  %v30 = vld [vmem:[%s2] sm:$0xff]
  %v31 = vld [vmem:[%s2 + $0x8] sm:$0xff]
  %33 = vset.pattern.permute.xlu0 0
  %34 = vperm.xlu0 %33, %v30
  %v35 = vpop.permute.xlu0 %34
  %38 = vset.pattern.permute.xlu0 0
  %39 = vperm.xlu0 %38, %v31
  %v40 = vpop.permute.xlu0 %39
  %v44 = vcombine.high %v26, %v26
  %v45 = vcombine.high %v27, %v27
  %vm46 = vcmask 31744
  %v48 = vsel %vm46, %v28, 0
  %v51 = vsel %vm46, %v29, 0
  %vm53 = vcmask 1043456
  %v54 = vsel %vm53, %v26, 0
  %v56 = vsel %vm53, %v44, 0
  %v58 = vsel %vm53, %v27, 0
  %v60 = vsel %vm53, %v45, 0
  %62 = vmatprep.subr.mxu0 %v56
  %63 = vmatpush1.msra.mxu0 %v54
  %64 = vmatprep.subr.mxu0 0.0
  %65 = vmatpush1.msra.mxu0 0.0
  %66 = vmatprep.subr.mxu0 0.0
  %67 = vmatpush1.msra.mxu0 0.0
  %68 = vmatprep.subr.mxu0 0.0
  %69 = vmatpush1.msra.mxu0 0.0
  %70 = vmatprep.subr.mxu0 0.0
  %71 = vmatpush1.msra.mxu0 0.0
  %72 = vmatprep.subr.mxu0 0.0
  %73 = vmatpush1.msra.mxu0 0.0
  %74 = vmatprep.subr.mxu0 0.0
  %75 = vmatpush1.msra.mxu0 0.0
  %76 = vmatprep.subr.mxu0 0.0
  %77 = vmatpush1.msra.mxu0 0.0
  %78 = vmatprep.subr.mxu0 0.0
  %79 = vmatpush1.msra.mxu0 0.0
  %80 = vmatprep.subr.mxu0 0.0
  %81 = vmatpush1.msra.mxu0 0.0
  %82 = vmatprep.subr.mxu0 0.0
  %83 = vmatpush1.msra.mxu0 0.0
  %84 = vmatprep.subr.mxu0 0.0
  %85 = vmatpush1.msra.mxu0 0.0
  %86 = vmatprep.subr.mxu0 0.0
  %87 = vmatpush1.msra.mxu0 0.0
  %88 = vmatprep.subr.mxu0 0.0
  %89 = vmatpush1.msra.mxu0 0.0
  %90 = vmatprep.subr.mxu0 0.0
  %91 = vmatpush1.msra.mxu0 0.0
  %92 = vmatprep.subr.mxu0 0.0
  %93 = vmatpush1.msra.mxu0 0.0
  %94 = vmatprep.subr.mxu0 0.0
  %95 = vmatpush1.msra.mxu0 0.0
  %96 = vmatprep.subr.mxu0 0.0
  %97 = vmatpush1.msra.mxu0 0.0
  %98 = vmatprep.subr.mxu0 0.0
  %99 = vmatpush1.msra.mxu0 0.0
  %100 = vmatprep.subr.mxu0 0.0
  %101 = vmatpush1.msra.mxu0 0.0
  %102 = vmatprep.subr.mxu0 0.0
  %103 = vmatpush1.msra.mxu0 0.0
  %104 = vmatprep.subr.mxu0 0.0
  %105 = vmatpush1.msra.mxu0 0.0
  %106 = vmatprep.subr.mxu0 0.0
  %107 = vmatpush1.msra.mxu0 0.0
  %108 = vmatprep.subr.mxu0 0.0
  %109 = vmatpush1.msra.mxu0 0.0
  %110 = vmatprep.subr.mxu0 0.0
  %111 = vmatpush1.msra.mxu0 0.0
  %112 = vmatprep.subr.mxu0 0.0
  %113 = vmatpush1.msra.mxu0 0.0
  %114 = vmatprep.subr.mxu0 0.0
  %115 = vmatpush1.msra.mxu0 0.0
  %116 = vmatprep.subr.mxu0 0.0
  %117 = vmatpush1.msra.mxu0 0.0
  %118 = vmatprep.subr.mxu0 0.0
  %119 = vmatpush1.msra.mxu0 0.0
  %120 = vmatprep.subr.mxu0 0.0
  %121 = vmatpush1.msra.mxu0 0.0
  %122 = vmatprep.subr.mxu0 0.0
  %123 = vmatpush1.msra.mxu0 0.0
  %124 = vmatprep.subr.mxu0 0.0
  %125 = vmatpush1.msra.mxu0 0.0
  %126 = vmatprep.mubr.f32.mxu0 0.0
  %127 = vmatmul.mubr.f32.gmra.mrb[0].mxu0 %v48
  %v128 = vpop.f32.mrb[0].mxu0
  %v129 = vadd.f32 %v35, %v128
  %v130 = vpop.f32.mrb[0].mxu0
  %v131 = vadd.f32 %v35, %v130
  %132 = vmatprep.mubr.f32.mxu0 0.0
  %133 = vmatmul.mubr.f32.gmra.mrb[0].mxu0 %v51
  %v134 = vpop.f32.mrb[0].mxu0
  %v135 = vadd.f32 %v40, %v134
  %v136 = vpop.f32.mrb[0].mxu0
  %v137 = vadd.f32 %v40, %v136
  %138 = vdwg.mxu0
  %139 = vmatprep.subr.mxu0 %v60
  %140 = vmatpush1.msra.mxu0 %v58
  %141 = vmatprep.subr.mxu0 0.0
  %142 = vmatpush1.msra.mxu0 0.0
  %143 = vmatprep.subr.mxu0 0.0
  %144 = vmatpush1.msra.mxu0 0.0
  %145 = vmatprep.subr.mxu0 0.0
  %146 = vmatpush1.msra.mxu0 0.0
  %147 = vmatprep.subr.mxu0 0.0
  %148 = vmatpush1.msra.mxu0 0.0
  %149 = vmatprep.subr.mxu0 0.0
  %150 = vmatpush1.msra.mxu0 0.0
  %151 = vmatprep.subr.mxu0 0.0
  %152 = vmatpush1.msra.mxu0 0.0
  %153 = vmatprep.subr.mxu0 0.0
  %154 = vmatpush1.msra.mxu0 0.0
  %155 = vmatprep.subr.mxu0 0.0
  %156 = vmatpush1.msra.mxu0 0.0
  %157 = vmatprep.subr.mxu0 0.0
  %158 = vmatpush1.msra.mxu0 0.0
  %159 = vmatprep.subr.mxu0 0.0
  %160 = vmatpush1.msra.mxu0 0.0
  %161 = vmatprep.subr.mxu0 0.0
  %162 = vmatpush1.msra.mxu0 0.0
  %163 = vmatprep.subr.mxu0 0.0
  %164 = vmatpush1.msra.mxu0 0.0
  %165 = vmatprep.subr.mxu0 0.0
  %166 = vmatpush1.msra.mxu0 0.0
  %167 = vmatprep.subr.mxu0 0.0
  %168 = vmatpush1.msra.mxu0 0.0
  %169 = vmatprep.subr.mxu0 0.0
  %170 = vmatpush1.msra.mxu0 0.0
  %171 = vmatprep.subr.mxu0 0.0
  %172 = vmatpush1.msra.mxu0 0.0
  %173 = vmatprep.subr.mxu0 0.0
  %174 = vmatpush1.msra.mxu0 0.0
  %175 = vmatprep.subr.mxu0 0.0
  %176 = vmatpush1.msra.mxu0 0.0
  %177 = vmatprep.subr.mxu0 0.0
  %178 = vmatpush1.msra.mxu0 0.0
  %179 = vmatprep.subr.mxu0 0.0
  %180 = vmatpush1.msra.mxu0 0.0
  %181 = vmatprep.subr.mxu0 0.0
  %182 = vmatpush1.msra.mxu0 0.0
  %183 = vmatprep.subr.mxu0 0.0
  %184 = vmatpush1.msra.mxu0 0.0
  %185 = vmatprep.subr.mxu0 0.0
  %186 = vmatpush1.msra.mxu0 0.0
  %187 = vmatprep.subr.mxu0 0.0
  %188 = vmatpush1.msra.mxu0 0.0
  %189 = vmatprep.subr.mxu0 0.0
  %190 = vmatpush1.msra.mxu0 0.0
  %191 = vmatprep.subr.mxu0 0.0
  %192 = vmatpush1.msra.mxu0 0.0
  %193 = vmatprep.subr.mxu0 0.0
  %194 = vmatpush1.msra.mxu0 0.0
  %195 = vmatprep.subr.mxu0 0.0
  %196 = vmatpush1.msra.mxu0 0.0
  %197 = vmatprep.subr.mxu0 0.0
  %198 = vmatpush1.msra.mxu0 0.0
  %199 = vmatprep.subr.mxu0 0.0
  %200 = vmatpush1.msra.mxu0 0.0
  %201 = vmatprep.subr.mxu0 0.0
  %202 = vmatpush1.msra.mxu0 0.0
  %203 = vmatprep.mubr.f32.mxu0 0.0
  %204 = vmatmul.mubr.f32.gmra.mrb[0].mxu0 %v48
  %v205 = vpop.f32.mrb[0].mxu0
  %v206 = vadd.f32 %v35, %v205
  %v207 = vpop.f32.mrb[0].mxu0
  %v208 = vadd.f32 %v35, %v207
  %209 = vmatprep.mubr.f32.mxu0 0.0
  %210 = vmatmul.mubr.f32.gmra.mrb[0].mxu0 %v51
  %v211 = vpop.f32.mrb[0].mxu0
  %v212 = vadd.f32 %v40, %v211
  %v213 = vpop.f32.mrb[0].mxu0
  %v214 = vadd.f32 %v40, %v213
  %215 = vdwg.mxu0
  %v216 = vmax.f32 %v129, 0.0
  %v217 = vmax.f32 %v131, 0.0
  %v218 = vmax.f32 %v206, 0.0
  %v219 = vmax.f32 %v208, 0.0
  %v220 = vmax.f32 %v135, 0.0
  %v221 = vmax.f32 %v137, 0.0
  %v222 = vmax.f32 %v212, 0.0
  %v223 = vmax.f32 %v214, 0.0
  %v224 = vld [vmem:[%s3] sm:$0xff]
  %v225 = vld [vmem:[%s3 + $0x8] sm:$0xff]
  %v226 = vld [vmem:[%s4] sm:$0xff]
  %v227 = vld [vmem:[%s4 + $0x8] sm:$0xff]
  %229 = vset.pattern.permute.xlu0 0
  %230 = vperm.xlu0 %229, %v226
  %v231 = vpop.permute.xlu0 %230
  %234 = vset.pattern.permute.xlu0 0
  %235 = vperm.xlu0 %234, %v227
  %v236 = vpop.permute.xlu0 %235
  %vm238 = vcmask 130048
  %v240 = vsel %vm238, %v224, 0
  %v243 = vsel %vm238, %v225, 0
  %245 = vmatprep.subr.mxu0 %v217
  %246 = vmatpush1.msra.mxu0 %v216
  %247 = vmatprep.subr.mxu0 %v221
  %248 = vmatpush1.msra.mxu0 %v220
  %249 = vmatprep.subr.mxu0 0.0
  %250 = vmatpush1.msra.mxu0 0.0
  %251 = vmatprep.subr.mxu0 0.0
  %252 = vmatpush1.msra.mxu0 0.0
  %253 = vmatprep.subr.mxu0 0.0
  %254 = vmatpush1.msra.mxu0 0.0
  %255 = vmatprep.subr.mxu0 0.0
  %256 = vmatpush1.msra.mxu0 0.0
  %257 = vmatprep.subr.mxu0 0.0
  %258 = vmatpush1.msra.mxu0 0.0
  %259 = vmatprep.subr.mxu0 0.0
  %260 = vmatpush1.msra.mxu0 0.0
  %261 = vmatprep.subr.mxu0 0.0
  %262 = vmatpush1.msra.mxu0 0.0
  %263 = vmatprep.subr.mxu0 0.0
  %264 = vmatpush1.msra.mxu0 0.0
  %265 = vmatprep.subr.mxu0 0.0
  %266 = vmatpush1.msra.mxu0 0.0
  %267 = vmatprep.subr.mxu0 0.0
  %268 = vmatpush1.msra.mxu0 0.0
  %269 = vmatprep.subr.mxu0 0.0
  %270 = vmatpush1.msra.mxu0 0.0
  %271 = vmatprep.subr.mxu0 0.0
  %272 = vmatpush1.msra.mxu0 0.0
  %273 = vmatprep.subr.mxu0 0.0
  %274 = vmatpush1.msra.mxu0 0.0
  %275 = vmatprep.subr.mxu0 0.0
  %276 = vmatpush1.msra.mxu0 0.0
  %277 = vmatprep.subr.mxu0 0.0
  %278 = vmatpush1.msra.mxu0 0.0
  %279 = vmatprep.subr.mxu0 0.0
  %280 = vmatpush1.msra.mxu0 0.0
  %281 = vmatprep.subr.mxu0 0.0
  %282 = vmatpush1.msra.mxu0 0.0
  %283 = vmatprep.subr.mxu0 0.0
  %284 = vmatpush1.msra.mxu0 0.0
  %285 = vmatprep.subr.mxu0 0.0
  %286 = vmatpush1.msra.mxu0 0.0
  %287 = vmatprep.subr.mxu0 0.0
  %288 = vmatpush1.msra.mxu0 0.0
  %289 = vmatprep.subr.mxu0 0.0
  %290 = vmatpush1.msra.mxu0 0.0
  %291 = vmatprep.subr.mxu0 0.0
  %292 = vmatpush1.msra.mxu0 0.0
  %293 = vmatprep.subr.mxu0 0.0
  %294 = vmatpush1.msra.mxu0 0.0
  %295 = vmatprep.subr.mxu0 0.0
  %296 = vmatpush1.msra.mxu0 0.0
  %297 = vmatprep.subr.mxu0 0.0
  %298 = vmatpush1.msra.mxu0 0.0
  %299 = vmatprep.subr.mxu0 0.0
  %300 = vmatpush1.msra.mxu0 0.0
  %301 = vmatprep.subr.mxu0 0.0
  %302 = vmatpush1.msra.mxu0 0.0
  %303 = vmatprep.subr.mxu0 0.0
  %304 = vmatpush1.msra.mxu0 0.0
  %305 = vmatprep.subr.mxu0 0.0
  %306 = vmatpush1.msra.mxu0 0.0
  %307 = vmatprep.subr.mxu0 0.0
  %308 = vmatpush1.msra.mxu0 0.0
  %309 = vmatprep.mubr.f32.mxu0 0.0
  %310 = vmatmul.mubr.f32.gmra.mrb[0].mxu0 %v240
  %v311 = vpop.f32.mrb[0].mxu0
  %v312 = vadd.f32 %v231, %v311
  %v313 = vpop.f32.mrb[0].mxu0
  %v314 = vadd.f32 %v231, %v313
  %315 = vmatprep.mubr.f32.mxu0 0.0
  %316 = vmatmul.mubr.f32.gmra.mrb[0].mxu0 %v243
  %v317 = vpop.f32.mrb[0].mxu0
  %v318 = vadd.f32 %v236, %v317
  %v319 = vpop.f32.mrb[0].mxu0
  %v320 = vadd.f32 %v236, %v319
  %321 = vdwg.mxu0
  %322 = vmatprep.subr.mxu0 %v219
  %323 = vmatpush1.msra.mxu0 %v218
  %324 = vmatprep.subr.mxu0 %v223
  %325 = vmatpush1.msra.mxu0 %v222
  %326 = vmatprep.subr.mxu0 0.0
  %327 = vmatpush1.msra.mxu0 0.0
  %328 = vmatprep.subr.mxu0 0.0
  %329 = vmatpush1.msra.mxu0 0.0
  %330 = vmatprep.subr.mxu0 0.0
  %331 = vmatpush1.msra.mxu0 0.0
  %332 = vmatprep.subr.mxu0 0.0
  %333 = vmatpush1.msra.mxu0 0.0
  %334 = vmatprep.subr.mxu0 0.0
  %335 = vmatpush1.msra.mxu0 0.0
  %336 = vmatprep.subr.mxu0 0.0
  %337 = vmatpush1.msra.mxu0 0.0
  %338 = vmatprep.subr.mxu0 0.0
  %339 = vmatpush1.msra.mxu0 0.0
  %340 = vmatprep.subr.mxu0 0.0
  %341 = vmatpush1.msra.mxu0 0.0
  %342 = vmatprep.subr.mxu0 0.0
  %343 = vmatpush1.msra.mxu0 0.0
  %344 = vmatprep.subr.mxu0 0.0
  %345 = vmatpush1.msra.mxu0 0.0
  %346 = vmatprep.subr.mxu0 0.0
  %347 = vmatpush1.msra.mxu0 0.0
  %348 = vmatprep.subr.mxu0 0.0
  %349 = vmatpush1.msra.mxu0 0.0
  %350 = vmatprep.subr.mxu0 0.0
  %351 = vmatpush1.msra.mxu0 0.0
  %352 = vmatprep.subr.mxu0 0.0
  %353 = vmatpush1.msra.mxu0 0.0
  %354 = vmatprep.subr.mxu0 0.0
  %355 = vmatpush1.msra.mxu0 0.0
  %356 = vmatprep.subr.mxu0 0.0
  %357 = vmatpush1.msra.mxu0 0.0
  %358 = vmatprep.subr.mxu0 0.0
  %359 = vmatpush1.msra.mxu0 0.0
  %360 = vmatprep.subr.mxu0 0.0
  %361 = vmatpush1.msra.mxu0 0.0
  %362 = vmatprep.subr.mxu0 0.0
  %363 = vmatpush1.msra.mxu0 0.0
  %364 = vmatprep.subr.mxu0 0.0
  %365 = vmatpush1.msra.mxu0 0.0
  %366 = vmatprep.subr.mxu0 0.0
  %367 = vmatpush1.msra.mxu0 0.0
  %368 = vmatprep.subr.mxu0 0.0
  %369 = vmatpush1.msra.mxu0 0.0
  %370 = vmatprep.subr.mxu0 0.0
  %371 = vmatpush1.msra.mxu0 0.0
  %372 = vmatprep.subr.mxu0 0.0
  %373 = vmatpush1.msra.mxu0 0.0
  %374 = vmatprep.subr.mxu0 0.0
  %375 = vmatpush1.msra.mxu0 0.0
  %376 = vmatprep.subr.mxu0 0.0
  %377 = vmatpush1.msra.mxu0 0.0
  %378 = vmatprep.subr.mxu0 0.0
  %379 = vmatpush1.msra.mxu0 0.0
  %380 = vmatprep.subr.mxu0 0.0
  %381 = vmatpush1.msra.mxu0 0.0
  %382 = vmatprep.subr.mxu0 0.0
  %383 = vmatpush1.msra.mxu0 0.0
  %384 = vmatprep.subr.mxu0 0.0
  %385 = vmatpush1.msra.mxu0 0.0
  %386 = vmatprep.mubr.f32.mxu0 0.0
  %387 = vmatmul.mubr.f32.gmra.mrb[0].mxu0 %v240
  %v388 = vpop.f32.mrb[0].mxu0
  %v389 = vadd.f32 %v231, %v388
  %v390 = vpop.f32.mrb[0].mxu0
  %v391 = vadd.f32 %v231, %v390
  %392 = vmatprep.mubr.f32.mxu0 0.0
  %393 = vmatmul.mubr.f32.gmra.mrb[0].mxu0 %v243
  %v394 = vpop.f32.mrb[0].mxu0
  %v395 = vadd.f32 %v236, %v394
  %v396 = vpop.f32.mrb[0].mxu0
  %v397 = vadd.f32 %v236, %v396
  %398 = vdwg.mxu0
  %v399 = vmax.f32 %v312, 0.0
  %v400 = vmax.f32 %v314, 0.0
  %v401 = vmax.f32 %v389, 0.0
  %v402 = vmax.f32 %v391, 0.0
  %v403 = vmax.f32 %v318, 0.0
  %v404 = vmax.f32 %v320, 0.0
  %v405 = vmax.f32 %v395, 0.0
  %v406 = vmax.f32 %v397, 0.0
  %v407 = vld [vmem:[%s5] sm:$0xff]
  %v408 = vld [vmem:[%s5 + $0x8] sm:$0xff]
  %v409 = vld [vmem:[%s6] sm:$0xff]
  %v410 = vld [vmem:[%s6 + $0x8] sm:$0xff]
  %412 = vset.pattern.permute.xlu0 0
  %413 = vperm.xlu0 %412, %v409
  %v414 = vpop.permute.xlu0 %413
  %417 = vset.pattern.permute.xlu0 0
  %418 = vperm.xlu0 %417, %v410
  %v419 = vpop.permute.xlu0 %418
  %v422 = vsel %vm238, %v407, 0
  %v425 = vsel %vm238, %v408, 0
  %427 = vmatprep.subr.mxu0 %v400
  %428 = vmatpush1.msra.mxu0 %v399
  %429 = vmatprep.subr.mxu0 %v404
  %430 = vmatpush1.msra.mxu0 %v403
  %431 = vmatprep.subr.mxu0 0.0
  %432 = vmatpush1.msra.mxu0 0.0
  %433 = vmatprep.subr.mxu0 0.0
  %434 = vmatpush1.msra.mxu0 0.0
  %435 = vmatprep.subr.mxu0 0.0
  %436 = vmatpush1.msra.mxu0 0.0
  %437 = vmatprep.subr.mxu0 0.0
  %438 = vmatpush1.msra.mxu0 0.0
  %439 = vmatprep.subr.mxu0 0.0
  %440 = vmatpush1.msra.mxu0 0.0
  %441 = vmatprep.subr.mxu0 0.0
  %442 = vmatpush1.msra.mxu0 0.0
  %443 = vmatprep.subr.mxu0 0.0
  %444 = vmatpush1.msra.mxu0 0.0
  %445 = vmatprep.subr.mxu0 0.0
  %446 = vmatpush1.msra.mxu0 0.0
  %447 = vmatprep.subr.mxu0 0.0
  %448 = vmatpush1.msra.mxu0 0.0
  %449 = vmatprep.subr.mxu0 0.0
  %450 = vmatpush1.msra.mxu0 0.0
  %451 = vmatprep.subr.mxu0 0.0
  %452 = vmatpush1.msra.mxu0 0.0
  %453 = vmatprep.subr.mxu0 0.0
  %454 = vmatpush1.msra.mxu0 0.0
  %455 = vmatprep.subr.mxu0 0.0
  %456 = vmatpush1.msra.mxu0 0.0
  %457 = vmatprep.subr.mxu0 0.0
  %458 = vmatpush1.msra.mxu0 0.0
  %459 = vmatprep.subr.mxu0 0.0
  %460 = vmatpush1.msra.mxu0 0.0
  %461 = vmatprep.subr.mxu0 0.0
  %462 = vmatpush1.msra.mxu0 0.0
  %463 = vmatprep.subr.mxu0 0.0
  %464 = vmatpush1.msra.mxu0 0.0
  %465 = vmatprep.subr.mxu0 0.0
  %466 = vmatpush1.msra.mxu0 0.0
  %467 = vmatprep.subr.mxu0 0.0
  %468 = vmatpush1.msra.mxu0 0.0
  %469 = vmatprep.subr.mxu0 0.0
  %470 = vmatpush1.msra.mxu0 0.0
  %471 = vmatprep.subr.mxu0 0.0
  %472 = vmatpush1.msra.mxu0 0.0
  %473 = vmatprep.subr.mxu0 0.0
  %474 = vmatpush1.msra.mxu0 0.0
  %475 = vmatprep.subr.mxu0 0.0
  %476 = vmatpush1.msra.mxu0 0.0
  %477 = vmatprep.subr.mxu0 0.0
  %478 = vmatpush1.msra.mxu0 0.0
  %479 = vmatprep.subr.mxu0 0.0
  %480 = vmatpush1.msra.mxu0 0.0
  %481 = vmatprep.subr.mxu0 0.0
  %482 = vmatpush1.msra.mxu0 0.0
  %483 = vmatprep.subr.mxu0 0.0
  %484 = vmatpush1.msra.mxu0 0.0
  %485 = vmatprep.subr.mxu0 0.0
  %486 = vmatpush1.msra.mxu0 0.0
  %487 = vmatprep.subr.mxu0 0.0
  %488 = vmatpush1.msra.mxu0 0.0
  %489 = vmatprep.subr.mxu0 0.0
  %490 = vmatpush1.msra.mxu0 0.0
  %491 = vmatprep.mubr.f32.mxu0 0.0
  %492 = vmatmul.mubr.f32.gmra.mrb[0].mxu0 %v422
  %v493 = vpop.f32.mrb[0].mxu0
  %v494 = vadd.f32 %v414, %v493
  %v495 = vpop.f32.mrb[0].mxu0
  %v496 = vadd.f32 %v414, %v495
  %497 = vmatprep.mubr.f32.mxu0 0.0
  %498 = vmatmul.mubr.f32.gmra.mrb[0].mxu0 %v425
  %v499 = vpop.f32.mrb[0].mxu0
  %v500 = vadd.f32 %v419, %v499
  %v501 = vpop.f32.mrb[0].mxu0
  %v502 = vadd.f32 %v419, %v501
  %503 = vdwg.mxu0
  %504 = vmatprep.subr.mxu0 %v402
  %505 = vmatpush1.msra.mxu0 %v401
  %506 = vmatprep.subr.mxu0 %v406
  %507 = vmatpush1.msra.mxu0 %v405
  %508 = vmatprep.subr.mxu0 0.0
  %509 = vmatpush1.msra.mxu0 0.0
  %510 = vmatprep.subr.mxu0 0.0
  %511 = vmatpush1.msra.mxu0 0.0
  %512 = vmatprep.subr.mxu0 0.0
  %513 = vmatpush1.msra.mxu0 0.0
  %514 = vmatprep.subr.mxu0 0.0
  %515 = vmatpush1.msra.mxu0 0.0
  %516 = vmatprep.subr.mxu0 0.0
  %517 = vmatpush1.msra.mxu0 0.0
  %518 = vmatprep.subr.mxu0 0.0
  %519 = vmatpush1.msra.mxu0 0.0
  %520 = vmatprep.subr.mxu0 0.0
  %521 = vmatpush1.msra.mxu0 0.0
  %522 = vmatprep.subr.mxu0 0.0
  %523 = vmatpush1.msra.mxu0 0.0
  %524 = vmatprep.subr.mxu0 0.0
  %525 = vmatpush1.msra.mxu0 0.0
  %526 = vmatprep.subr.mxu0 0.0
  %527 = vmatpush1.msra.mxu0 0.0
  %528 = vmatprep.subr.mxu0 0.0
  %529 = vmatpush1.msra.mxu0 0.0
  %530 = vmatprep.subr.mxu0 0.0
  %531 = vmatpush1.msra.mxu0 0.0
  %532 = vmatprep.subr.mxu0 0.0
  %533 = vmatpush1.msra.mxu0 0.0
  %534 = vmatprep.subr.mxu0 0.0
  %535 = vmatpush1.msra.mxu0 0.0
  %536 = vmatprep.subr.mxu0 0.0
  %537 = vmatpush1.msra.mxu0 0.0
  %538 = vmatprep.subr.mxu0 0.0
  %539 = vmatpush1.msra.mxu0 0.0
  %540 = vmatprep.subr.mxu0 0.0
  %541 = vmatpush1.msra.mxu0 0.0
  %542 = vmatprep.subr.mxu0 0.0
  %543 = vmatpush1.msra.mxu0 0.0
  %544 = vmatprep.subr.mxu0 0.0
  %545 = vmatpush1.msra.mxu0 0.0
  %546 = vmatprep.subr.mxu0 0.0
  %547 = vmatpush1.msra.mxu0 0.0
  %548 = vmatprep.subr.mxu0 0.0
  %549 = vmatpush1.msra.mxu0 0.0
  %550 = vmatprep.subr.mxu0 0.0
  %551 = vmatpush1.msra.mxu0 0.0
  %552 = vmatprep.subr.mxu0 0.0
  %553 = vmatpush1.msra.mxu0 0.0
  %554 = vmatprep.subr.mxu0 0.0
  %555 = vmatpush1.msra.mxu0 0.0
  %556 = vmatprep.subr.mxu0 0.0
  %557 = vmatpush1.msra.mxu0 0.0
  %558 = vmatprep.subr.mxu0 0.0
  %559 = vmatpush1.msra.mxu0 0.0
  %560 = vmatprep.subr.mxu0 0.0
  %561 = vmatpush1.msra.mxu0 0.0
  %562 = vmatprep.subr.mxu0 0.0
  %563 = vmatpush1.msra.mxu0 0.0
  %564 = vmatprep.subr.mxu0 0.0
  %565 = vmatpush1.msra.mxu0 0.0
  %566 = vmatprep.subr.mxu0 0.0
  %567 = vmatpush1.msra.mxu0 0.0
  %568 = vmatprep.mubr.f32.mxu0 0.0
  %569 = vmatmul.mubr.f32.gmra.mrb[0].mxu0 %v422
  %v570 = vpop.f32.mrb[0].mxu0
  %v571 = vadd.f32 %v414, %v570
  %v572 = vpop.f32.mrb[0].mxu0
  %v573 = vadd.f32 %v414, %v572
  %574 = vmatprep.mubr.f32.mxu0 0.0
  %575 = vmatmul.mubr.f32.gmra.mrb[0].mxu0 %v425
  %v576 = vpop.f32.mrb[0].mxu0
  %v577 = vadd.f32 %v419, %v576
  %v578 = vpop.f32.mrb[0].mxu0
  %v579 = vadd.f32 %v419, %v578
  %580 = vdwg.mxu0
  %v581 = vmax.f32 %v494, %v496
  %v582 = vmax.f32 %v500, %v502
  %v583 = vmax.f32 %v581, %v571
  %v584 = vmax.f32 %v582, %v577
  %v585 = vmax.f32 %v583, %v573
  %v586 = vmax.f32 %v584, %v579
  %v587 = vld [vmem:[%s0 + $0x10] sm:$0xff]
  %v588 = vld [vmem:[%s0 + $0x18] sm:$0xff]
  %v591 = vcombine.high %v587, %v587
  %v592 = vcombine.high %v588, %v588
  %v593 = vsel %vm53, %v587, 0
  %v595 = vsel %vm53, %v591, 0
  %v597 = vsel %vm53, %v588, 0
  %v599 = vsel %vm53, %v592, 0
  %601 = vmatprep.subr.mxu0 %v595
  %602 = vmatpush1.msra.mxu0 %v593
  %603 = vmatprep.subr.mxu0 0.0
  %604 = vmatpush1.msra.mxu0 0.0
  %605 = vmatprep.subr.mxu0 0.0
  %606 = vmatpush1.msra.mxu0 0.0
  %607 = vmatprep.subr.mxu0 0.0
  %608 = vmatpush1.msra.mxu0 0.0
  %609 = vmatprep.subr.mxu0 0.0
  %610 = vmatpush1.msra.mxu0 0.0
  %611 = vmatprep.subr.mxu0 0.0
  %612 = vmatpush1.msra.mxu0 0.0
  %613 = vmatprep.subr.mxu0 0.0
  %614 = vmatpush1.msra.mxu0 0.0
  %615 = vmatprep.subr.mxu0 0.0
  %616 = vmatpush1.msra.mxu0 0.0
  %617 = vmatprep.subr.mxu0 0.0
  %618 = vmatpush1.msra.mxu0 0.0
  %619 = vmatprep.subr.mxu0 0.0
  %620 = vmatpush1.msra.mxu0 0.0
  %621 = vmatprep.subr.mxu0 0.0
  %622 = vmatpush1.msra.mxu0 0.0
  %623 = vmatprep.subr.mxu0 0.0
  %624 = vmatpush1.msra.mxu0 0.0
  %625 = vmatprep.subr.mxu0 0.0
  %626 = vmatpush1.msra.mxu0 0.0
  %627 = vmatprep.subr.mxu0 0.0
  %628 = vmatpush1.msra.mxu0 0.0
  %629 = vmatprep.subr.mxu0 0.0
  %630 = vmatpush1.msra.mxu0 0.0
  %631 = vmatprep.subr.mxu0 0.0
  %632 = vmatpush1.msra.mxu0 0.0
  %633 = vmatprep.subr.mxu0 0.0
  %634 = vmatpush1.msra.mxu0 0.0
  %635 = vmatprep.subr.mxu0 0.0
  %636 = vmatpush1.msra.mxu0 0.0
  %637 = vmatprep.subr.mxu0 0.0
  %638 = vmatpush1.msra.mxu0 0.0
  %639 = vmatprep.subr.mxu0 0.0
  %640 = vmatpush1.msra.mxu0 0.0
  %641 = vmatprep.subr.mxu0 0.0
  %642 = vmatpush1.msra.mxu0 0.0
  %643 = vmatprep.subr.mxu0 0.0
  %644 = vmatpush1.msra.mxu0 0.0
  %645 = vmatprep.subr.mxu0 0.0
  %646 = vmatpush1.msra.mxu0 0.0
  %647 = vmatprep.subr.mxu0 0.0
  %648 = vmatpush1.msra.mxu0 0.0
  %649 = vmatprep.subr.mxu0 0.0
  %650 = vmatpush1.msra.mxu0 0.0
  %651 = vmatprep.subr.mxu0 0.0
  %652 = vmatpush1.msra.mxu0 0.0
  %653 = vmatprep.subr.mxu0 0.0
  %654 = vmatpush1.msra.mxu0 0.0
  %655 = vmatprep.subr.mxu0 0.0
  %656 = vmatpush1.msra.mxu0 0.0
  %657 = vmatprep.subr.mxu0 0.0
  %658 = vmatpush1.msra.mxu0 0.0
  %659 = vmatprep.subr.mxu0 0.0
  %660 = vmatpush1.msra.mxu0 0.0
  %661 = vmatprep.subr.mxu0 0.0
  %662 = vmatpush1.msra.mxu0 0.0
  %663 = vmatprep.subr.mxu0 0.0
  %664 = vmatpush1.msra.mxu0 0.0
  %665 = vmatprep.mubr.f32.mxu0 0.0
  %666 = vmatmul.mubr.f32.gmra.mrb[0].mxu0 %v48
  %v667 = vpop.f32.mrb[0].mxu0
  %v668 = vadd.f32 %v35, %v667
  %v669 = vpop.f32.mrb[0].mxu0
  %v670 = vadd.f32 %v35, %v669
  %671 = vmatprep.mubr.f32.mxu0 0.0
  %672 = vmatmul.mubr.f32.gmra.mrb[0].mxu0 %v51
  %v673 = vpop.f32.mrb[0].mxu0
  %v674 = vadd.f32 %v40, %v673
  %v675 = vpop.f32.mrb[0].mxu0
  %v676 = vadd.f32 %v40, %v675
  %677 = vdwg.mxu0
  %678 = vmatprep.subr.mxu0 %v599
  %679 = vmatpush1.msra.mxu0 %v597
  %680 = vmatprep.subr.mxu0 0.0
  %681 = vmatpush1.msra.mxu0 0.0
  %682 = vmatprep.subr.mxu0 0.0
  %683 = vmatpush1.msra.mxu0 0.0
  %684 = vmatprep.subr.mxu0 0.0
  %685 = vmatpush1.msra.mxu0 0.0
  %686 = vmatprep.subr.mxu0 0.0
  %687 = vmatpush1.msra.mxu0 0.0
  %688 = vmatprep.subr.mxu0 0.0
  %689 = vmatpush1.msra.mxu0 0.0
  %690 = vmatprep.subr.mxu0 0.0
  %691 = vmatpush1.msra.mxu0 0.0
  %692 = vmatprep.subr.mxu0 0.0
  %693 = vmatpush1.msra.mxu0 0.0
  %694 = vmatprep.subr.mxu0 0.0
  %695 = vmatpush1.msra.mxu0 0.0
  %696 = vmatprep.subr.mxu0 0.0
  %697 = vmatpush1.msra.mxu0 0.0
  %698 = vmatprep.subr.mxu0 0.0
  %699 = vmatpush1.msra.mxu0 0.0
  %700 = vmatprep.subr.mxu0 0.0
  %701 = vmatpush1.msra.mxu0 0.0
  %702 = vmatprep.subr.mxu0 0.0
  %703 = vmatpush1.msra.mxu0 0.0
  %704 = vmatprep.subr.mxu0 0.0
  %705 = vmatpush1.msra.mxu0 0.0
  %706 = vmatprep.subr.mxu0 0.0
  %707 = vmatpush1.msra.mxu0 0.0
  %708 = vmatprep.subr.mxu0 0.0
  %709 = vmatpush1.msra.mxu0 0.0
  %710 = vmatprep.subr.mxu0 0.0
  %711 = vmatpush1.msra.mxu0 0.0
  %712 = vmatprep.subr.mxu0 0.0
  %713 = vmatpush1.msra.mxu0 0.0
  %714 = vmatprep.subr.mxu0 0.0
  %715 = vmatpush1.msra.mxu0 0.0
  %716 = vmatprep.subr.mxu0 0.0
  %717 = vmatpush1.msra.mxu0 0.0
  %718 = vmatprep.subr.mxu0 0.0
  %719 = vmatpush1.msra.mxu0 0.0
  %720 = vmatprep.subr.mxu0 0.0
  %721 = vmatpush1.msra.mxu0 0.0
  %722 = vmatprep.subr.mxu0 0.0
  %723 = vmatpush1.msra.mxu0 0.0
  %724 = vmatprep.subr.mxu0 0.0
  %725 = vmatpush1.msra.mxu0 0.0
  %726 = vmatprep.subr.mxu0 0.0
  %727 = vmatpush1.msra.mxu0 0.0
  %728 = vmatprep.subr.mxu0 0.0
  %729 = vmatpush1.msra.mxu0 0.0
  %730 = vmatprep.subr.mxu0 0.0
  %731 = vmatpush1.msra.mxu0 0.0
  %732 = vmatprep.subr.mxu0 0.0
  %733 = vmatpush1.msra.mxu0 0.0
  %734 = vmatprep.subr.mxu0 0.0
  %735 = vmatpush1.msra.mxu0 0.0
  %736 = vmatprep.subr.mxu0 0.0
  %737 = vmatpush1.msra.mxu0 0.0
  %738 = vmatprep.subr.mxu0 0.0
  %739 = vmatpush1.msra.mxu0 0.0
  %740 = vmatprep.subr.mxu0 0.0
  %741 = vmatpush1.msra.mxu0 0.0
  %742 = vmatprep.mubr.f32.mxu0 0.0
  %743 = vmatmul.mubr.f32.gmra.mrb[0].mxu0 %v48
  %v744 = vpop.f32.mrb[0].mxu0
  %v745 = vadd.f32 %v35, %v744
  %v746 = vpop.f32.mrb[0].mxu0
  %v747 = vadd.f32 %v35, %v746
  %748 = vmatprep.mubr.f32.mxu0 0.0
  %749 = vmatmul.mubr.f32.gmra.mrb[0].mxu0 %v51
  %v750 = vpop.f32.mrb[0].mxu0
  %v751 = vadd.f32 %v40, %v750
  %v752 = vpop.f32.mrb[0].mxu0
  %v753 = vadd.f32 %v40, %v752
  %754 = vdwg.mxu0
  %v755 = vmax.f32 %v668, 0.0
  %v756 = vmax.f32 %v670, 0.0
  %v757 = vmax.f32 %v745, 0.0
  %v758 = vmax.f32 %v747, 0.0
  %v759 = vmax.f32 %v674, 0.0
  %v760 = vmax.f32 %v676, 0.0
  %v761 = vmax.f32 %v751, 0.0
  %v762 = vmax.f32 %v753, 0.0
  %763 = vmatprep.subr.mxu0 %v756
  %764 = vmatpush1.msra.mxu0 %v755
  %765 = vmatprep.subr.mxu0 %v760
  %766 = vmatpush1.msra.mxu0 %v759
  %767 = vmatprep.subr.mxu0 0.0
  %768 = vmatpush1.msra.mxu0 0.0
  %769 = vmatprep.subr.mxu0 0.0
  %770 = vmatpush1.msra.mxu0 0.0
  %771 = vmatprep.subr.mxu0 0.0
  %772 = vmatpush1.msra.mxu0 0.0
  %773 = vmatprep.subr.mxu0 0.0
  %774 = vmatpush1.msra.mxu0 0.0
  %775 = vmatprep.subr.mxu0 0.0
  %776 = vmatpush1.msra.mxu0 0.0
  %777 = vmatprep.subr.mxu0 0.0
  %778 = vmatpush1.msra.mxu0 0.0
  %779 = vmatprep.subr.mxu0 0.0
  %780 = vmatpush1.msra.mxu0 0.0
  %781 = vmatprep.subr.mxu0 0.0
  %782 = vmatpush1.msra.mxu0 0.0
  %783 = vmatprep.subr.mxu0 0.0
  %784 = vmatpush1.msra.mxu0 0.0
  %785 = vmatprep.subr.mxu0 0.0
  %786 = vmatpush1.msra.mxu0 0.0
  %787 = vmatprep.subr.mxu0 0.0
  %788 = vmatpush1.msra.mxu0 0.0
  %789 = vmatprep.subr.mxu0 0.0
  %790 = vmatpush1.msra.mxu0 0.0
  %791 = vmatprep.subr.mxu0 0.0
  %792 = vmatpush1.msra.mxu0 0.0
  %793 = vmatprep.subr.mxu0 0.0
  %794 = vmatpush1.msra.mxu0 0.0
  %795 = vmatprep.subr.mxu0 0.0
  %796 = vmatpush1.msra.mxu0 0.0
  %797 = vmatprep.subr.mxu0 0.0
  %798 = vmatpush1.msra.mxu0 0.0
  %799 = vmatprep.subr.mxu0 0.0
  %800 = vmatpush1.msra.mxu0 0.0
  %801 = vmatprep.subr.mxu0 0.0
  %802 = vmatpush1.msra.mxu0 0.0
  %803 = vmatprep.subr.mxu0 0.0
  %804 = vmatpush1.msra.mxu0 0.0
  %805 = vmatprep.subr.mxu0 0.0
  %806 = vmatpush1.msra.mxu0 0.0
  %807 = vmatprep.subr.mxu0 0.0
  %808 = vmatpush1.msra.mxu0 0.0
  %809 = vmatprep.subr.mxu0 0.0
  %810 = vmatpush1.msra.mxu0 0.0
  %811 = vmatprep.subr.mxu0 0.0
  %812 = vmatpush1.msra.mxu0 0.0
  %813 = vmatprep.subr.mxu0 0.0
  %814 = vmatpush1.msra.mxu0 0.0
  %815 = vmatprep.subr.mxu0 0.0
  %816 = vmatpush1.msra.mxu0 0.0
  %817 = vmatprep.subr.mxu0 0.0
  %818 = vmatpush1.msra.mxu0 0.0
  %819 = vmatprep.subr.mxu0 0.0
  %820 = vmatpush1.msra.mxu0 0.0
  %821 = vmatprep.subr.mxu0 0.0
  %822 = vmatpush1.msra.mxu0 0.0
  %823 = vmatprep.subr.mxu0 0.0
  %824 = vmatpush1.msra.mxu0 0.0
  %825 = vmatprep.subr.mxu0 0.0
  %826 = vmatpush1.msra.mxu0 0.0
  %827 = vmatprep.mubr.f32.mxu0 0.0
  %828 = vmatmul.mubr.f32.gmra.mrb[0].mxu0 %v240
  %v829 = vpop.f32.mrb[0].mxu0
  %v830 = vadd.f32 %v231, %v829
  %v831 = vpop.f32.mrb[0].mxu0
  %v832 = vadd.f32 %v231, %v831
  %833 = vmatprep.mubr.f32.mxu0 0.0
  %834 = vmatmul.mubr.f32.gmra.mrb[0].mxu0 %v243
  %v835 = vpop.f32.mrb[0].mxu0
  %v836 = vadd.f32 %v236, %v835
  %v837 = vpop.f32.mrb[0].mxu0
  %v838 = vadd.f32 %v236, %v837
  %839 = vdwg.mxu0
  %840 = vmatprep.subr.mxu0 %v758
  %841 = vmatpush1.msra.mxu0 %v757
  %842 = vmatprep.subr.mxu0 %v762
  %843 = vmatpush1.msra.mxu0 %v761
  %844 = vmatprep.subr.mxu0 0.0
  %845 = vmatpush1.msra.mxu0 0.0
  %846 = vmatprep.subr.mxu0 0.0
  %847 = vmatpush1.msra.mxu0 0.0
  %848 = vmatprep.subr.mxu0 0.0
  %849 = vmatpush1.msra.mxu0 0.0
  %850 = vmatprep.subr.mxu0 0.0
  %851 = vmatpush1.msra.mxu0 0.0
  %852 = vmatprep.subr.mxu0 0.0
  %853 = vmatpush1.msra.mxu0 0.0
  %854 = vmatprep.subr.mxu0 0.0
  %855 = vmatpush1.msra.mxu0 0.0
  %856 = vmatprep.subr.mxu0 0.0
  %857 = vmatpush1.msra.mxu0 0.0
  %858 = vmatprep.subr.mxu0 0.0
  %859 = vmatpush1.msra.mxu0 0.0
  %860 = vmatprep.subr.mxu0 0.0
  %861 = vmatpush1.msra.mxu0 0.0
  %862 = vmatprep.subr.mxu0 0.0
  %863 = vmatpush1.msra.mxu0 0.0
  %864 = vmatprep.subr.mxu0 0.0
  %865 = vmatpush1.msra.mxu0 0.0
  %866 = vmatprep.subr.mxu0 0.0
  %867 = vmatpush1.msra.mxu0 0.0
  %868 = vmatprep.subr.mxu0 0.0
  %869 = vmatpush1.msra.mxu0 0.0
  %870 = vmatprep.subr.mxu0 0.0
  %871 = vmatpush1.msra.mxu0 0.0
  %872 = vmatprep.subr.mxu0 0.0
  %873 = vmatpush1.msra.mxu0 0.0
  %874 = vmatprep.subr.mxu0 0.0
  %875 = vmatpush1.msra.mxu0 0.0
  %876 = vmatprep.subr.mxu0 0.0
  %877 = vmatpush1.msra.mxu0 0.0
  %878 = vmatprep.subr.mxu0 0.0
  %879 = vmatpush1.msra.mxu0 0.0
  %880 = vmatprep.subr.mxu0 0.0
  %881 = vmatpush1.msra.mxu0 0.0
  %882 = vmatprep.subr.mxu0 0.0
  %883 = vmatpush1.msra.mxu0 0.0
  %884 = vmatprep.subr.mxu0 0.0
  %885 = vmatpush1.msra.mxu0 0.0
  %886 = vmatprep.subr.mxu0 0.0
  %887 = vmatpush1.msra.mxu0 0.0
  %888 = vmatprep.subr.mxu0 0.0
  %889 = vmatpush1.msra.mxu0 0.0
  %890 = vmatprep.subr.mxu0 0.0
  %891 = vmatpush1.msra.mxu0 0.0
  %892 = vmatprep.subr.mxu0 0.0
  %893 = vmatpush1.msra.mxu0 0.0
  %894 = vmatprep.subr.mxu0 0.0
  %895 = vmatpush1.msra.mxu0 0.0
  %896 = vmatprep.subr.mxu0 0.0
  %897 = vmatpush1.msra.mxu0 0.0
  %898 = vmatprep.subr.mxu0 0.0
  %899 = vmatpush1.msra.mxu0 0.0
  %900 = vmatprep.subr.mxu0 0.0
  %901 = vmatpush1.msra.mxu0 0.0
  %902 = vmatprep.subr.mxu0 0.0
  %903 = vmatpush1.msra.mxu0 0.0
  %904 = vmatprep.mubr.f32.mxu0 0.0
  %905 = vmatmul.mubr.f32.gmra.mrb[0].mxu0 %v240
  %v906 = vpop.f32.mrb[0].mxu0
  %v907 = vadd.f32 %v231, %v906
  %v908 = vpop.f32.mrb[0].mxu0
  %v909 = vadd.f32 %v231, %v908
  %910 = vmatprep.mubr.f32.mxu0 0.0
  %911 = vmatmul.mubr.f32.gmra.mrb[0].mxu0 %v243
  %v912 = vpop.f32.mrb[0].mxu0
  %v913 = vadd.f32 %v236, %v912
  %v914 = vpop.f32.mrb[0].mxu0
  %v915 = vadd.f32 %v236, %v914
  %916 = vdwg.mxu0
  %v917 = vmax.f32 %v830, 0.0
  %v918 = vmax.f32 %v832, 0.0
  %v919 = vmax.f32 %v907, 0.0
  %v920 = vmax.f32 %v909, 0.0
  %v921 = vmax.f32 %v836, 0.0
  %v922 = vmax.f32 %v838, 0.0
  %v923 = vmax.f32 %v913, 0.0
  %v924 = vmax.f32 %v915, 0.0
  %925 = vmatprep.subr.mxu0 %v918
  %926 = vmatpush1.msra.mxu0 %v917
  %927 = vmatprep.subr.mxu0 %v922
  %928 = vmatpush1.msra.mxu0 %v921
  %929 = vmatprep.subr.mxu0 0.0
  %930 = vmatpush1.msra.mxu0 0.0
  %931 = vmatprep.subr.mxu0 0.0
  %932 = vmatpush1.msra.mxu0 0.0
  %933 = vmatprep.subr.mxu0 0.0
  %934 = vmatpush1.msra.mxu0 0.0
  %935 = vmatprep.subr.mxu0 0.0
  %936 = vmatpush1.msra.mxu0 0.0
  %937 = vmatprep.subr.mxu0 0.0
  %938 = vmatpush1.msra.mxu0 0.0
  %939 = vmatprep.subr.mxu0 0.0
  %940 = vmatpush1.msra.mxu0 0.0
  %941 = vmatprep.subr.mxu0 0.0
  %942 = vmatpush1.msra.mxu0 0.0
  %943 = vmatprep.subr.mxu0 0.0
  %944 = vmatpush1.msra.mxu0 0.0
  %945 = vmatprep.subr.mxu0 0.0
  %946 = vmatpush1.msra.mxu0 0.0
  %947 = vmatprep.subr.mxu0 0.0
  %948 = vmatpush1.msra.mxu0 0.0
  %949 = vmatprep.subr.mxu0 0.0
  %950 = vmatpush1.msra.mxu0 0.0
  %951 = vmatprep.subr.mxu0 0.0
  %952 = vmatpush1.msra.mxu0 0.0
  %953 = vmatprep.subr.mxu0 0.0
  %954 = vmatpush1.msra.mxu0 0.0
  %955 = vmatprep.subr.mxu0 0.0
  %956 = vmatpush1.msra.mxu0 0.0
  %957 = vmatprep.subr.mxu0 0.0
  %958 = vmatpush1.msra.mxu0 0.0
  %959 = vmatprep.subr.mxu0 0.0
  %960 = vmatpush1.msra.mxu0 0.0
  %961 = vmatprep.subr.mxu0 0.0
  %962 = vmatpush1.msra.mxu0 0.0
  %963 = vmatprep.subr.mxu0 0.0
  %964 = vmatpush1.msra.mxu0 0.0
  %965 = vmatprep.subr.mxu0 0.0
  %966 = vmatpush1.msra.mxu0 0.0
  %967 = vmatprep.subr.mxu0 0.0
  %968 = vmatpush1.msra.mxu0 0.0
  %969 = vmatprep.subr.mxu0 0.0
  %970 = vmatpush1.msra.mxu0 0.0
  %971 = vmatprep.subr.mxu0 0.0
  %972 = vmatpush1.msra.mxu0 0.0
  %973 = vmatprep.subr.mxu0 0.0
  %974 = vmatpush1.msra.mxu0 0.0
  %975 = vmatprep.subr.mxu0 0.0
  %976 = vmatpush1.msra.mxu0 0.0
  %977 = vmatprep.subr.mxu0 0.0
  %978 = vmatpush1.msra.mxu0 0.0
  %979 = vmatprep.subr.mxu0 0.0
  %980 = vmatpush1.msra.mxu0 0.0
  %981 = vmatprep.subr.mxu0 0.0
  %982 = vmatpush1.msra.mxu0 0.0
  %983 = vmatprep.subr.mxu0 0.0
  %984 = vmatpush1.msra.mxu0 0.0
  %985 = vmatprep.subr.mxu0 0.0
  %986 = vmatpush1.msra.mxu0 0.0
  %987 = vmatprep.subr.mxu0 0.0
  %988 = vmatpush1.msra.mxu0 0.0
  %989 = vmatprep.mubr.f32.mxu0 0.0
  %990 = vmatmul.mubr.f32.gmra.mrb[0].mxu0 %v422
  %v991 = vpop.f32.mrb[0].mxu0
  %v992 = vadd.f32 %v414, %v991
  %v993 = vpop.f32.mrb[0].mxu0
  %v994 = vadd.f32 %v414, %v993
  %995 = vmatprep.mubr.f32.mxu0 0.0
  %996 = vmatmul.mubr.f32.gmra.mrb[0].mxu0 %v425
  %v997 = vpop.f32.mrb[0].mxu0
  %v998 = vadd.f32 %v419, %v997
  %v999 = vpop.f32.mrb[0].mxu0
  %v1000 = vadd.f32 %v419, %v999
  %1001 = vdwg.mxu0
  %1002 = vmatprep.subr.mxu0 %v920
  %1003 = vmatpush1.msra.mxu0 %v919
  %1004 = vmatprep.subr.mxu0 %v924
  %1005 = vmatpush1.msra.mxu0 %v923
  %1006 = vmatprep.subr.mxu0 0.0
  %1007 = vmatpush1.msra.mxu0 0.0
  %1008 = vmatprep.subr.mxu0 0.0
  %1009 = vmatpush1.msra.mxu0 0.0
  %1010 = vmatprep.subr.mxu0 0.0
  %1011 = vmatpush1.msra.mxu0 0.0
  %1012 = vmatprep.subr.mxu0 0.0
  %1013 = vmatpush1.msra.mxu0 0.0
  %1014 = vmatprep.subr.mxu0 0.0
  %1015 = vmatpush1.msra.mxu0 0.0
  %1016 = vmatprep.subr.mxu0 0.0
  %1017 = vmatpush1.msra.mxu0 0.0
  %1018 = vmatprep.subr.mxu0 0.0
  %1019 = vmatpush1.msra.mxu0 0.0
  %1020 = vmatprep.subr.mxu0 0.0
  %1021 = vmatpush1.msra.mxu0 0.0
  %1022 = vmatprep.subr.mxu0 0.0
  %1023 = vmatpush1.msra.mxu0 0.0
  %1024 = vmatprep.subr.mxu0 0.0
  %1025 = vmatpush1.msra.mxu0 0.0
  %1026 = vmatprep.subr.mxu0 0.0
  %1027 = vmatpush1.msra.mxu0 0.0
  %1028 = vmatprep.subr.mxu0 0.0
  %1029 = vmatpush1.msra.mxu0 0.0
  %1030 = vmatprep.subr.mxu0 0.0
  %1031 = vmatpush1.msra.mxu0 0.0
  %1032 = vmatprep.subr.mxu0 0.0
  %1033 = vmatpush1.msra.mxu0 0.0
  %1034 = vmatprep.subr.mxu0 0.0
  %1035 = vmatpush1.msra.mxu0 0.0
  %1036 = vmatprep.subr.mxu0 0.0
  %1037 = vmatpush1.msra.mxu0 0.0
  %1038 = vmatprep.subr.mxu0 0.0
  %1039 = vmatpush1.msra.mxu0 0.0
  %1040 = vmatprep.subr.mxu0 0.0
  %1041 = vmatpush1.msra.mxu0 0.0
  %1042 = vmatprep.subr.mxu0 0.0
  %1043 = vmatpush1.msra.mxu0 0.0
  %1044 = vmatprep.subr.mxu0 0.0
  %1045 = vmatpush1.msra.mxu0 0.0
  %1046 = vmatprep.subr.mxu0 0.0
  %1047 = vmatpush1.msra.mxu0 0.0
  %1048 = vmatprep.subr.mxu0 0.0
  %1049 = vmatpush1.msra.mxu0 0.0
  %1050 = vmatprep.subr.mxu0 0.0
  %1051 = vmatpush1.msra.mxu0 0.0
  %1052 = vmatprep.subr.mxu0 0.0
  %1053 = vmatpush1.msra.mxu0 0.0
  %1054 = vmatprep.subr.mxu0 0.0
  %1055 = vmatpush1.msra.mxu0 0.0
  %1056 = vmatprep.subr.mxu0 0.0
  %1057 = vmatpush1.msra.mxu0 0.0
  %1058 = vmatprep.subr.mxu0 0.0
  %1059 = vmatpush1.msra.mxu0 0.0
  %1060 = vmatprep.subr.mxu0 0.0
  %1061 = vmatpush1.msra.mxu0 0.0
  %1062 = vmatprep.subr.mxu0 0.0
  %1063 = vmatpush1.msra.mxu0 0.0
  %1064 = vmatprep.subr.mxu0 0.0
  %1065 = vmatpush1.msra.mxu0 0.0
  %1066 = vmatprep.mubr.f32.mxu0 0.0
  %1067 = vmatmul.mubr.f32.gmra.mrb[0].mxu0 %v422
  %v1068 = vpop.f32.mrb[0].mxu0
  %v1069 = vadd.f32 %v414, %v1068
  %v1070 = vpop.f32.mrb[0].mxu0
  %v1071 = vadd.f32 %v414, %v1070
  %1072 = vmatprep.mubr.f32.mxu0 0.0
  %1073 = vmatmul.mubr.f32.gmra.mrb[0].mxu0 %v425
  %v1074 = vpop.f32.mrb[0].mxu0
  %v1075 = vadd.f32 %v419, %v1074
  %v1076 = vpop.f32.mrb[0].mxu0
  %v1077 = vadd.f32 %v419, %v1076
  %1078 = vdwg.mxu0
  %v1079 = vlaneseq
  %v1080 = vand.u32 %v1079, 127
  %v1081 = vadd.s32 %v1080, 128
  %v1082 = vadd.s32 %v1080, 256
  %v1083 = vadd.s32 %v1080, 384
  %s1084 = smul.u32 0, 1024
  %s1085 = sadd.s32 %s1084, 512
  %v1086 = vstv %s1085
  %v1087 = vadd.s32 %v1080, %v1086
  %v1088 = vadd.s32 %v1081, %v1086
  %v1089 = vadd.s32 %v1082, %v1086
  %v1090 = vadd.s32 %v1083, %v1086
  %vm1091 = vcmp.lt.s32.totalorder %v1087, 1000
  %vm1092 = vcmp.lt.s32.totalorder %v1088, 1000
  %vm1093 = vcmp.lt.s32.totalorder %v1089, 1000
  %vm1094 = vcmp.lt.s32.totalorder %v1090, 1000
  %v1095 = vsel %vm1091, %v992, -inf
  %v1096 = vsel %vm1092, %v994, -inf
  %v1097 = vsel %vm1093, %v1069, -inf
  %v1098 = vsel %vm1094, %v1071, -inf
  %v1099 = vsel %vm1091, %v998, -inf
  %v1100 = vsel %vm1092, %v1000, -inf
  %v1101 = vsel %vm1093, %v1075, -inf
  %v1102 = vsel %vm1094, %v1077, -inf
  %v1103 = vmax.f32 %v1095, %v1096
  %v1104 = vmax.f32 %v1099, %v1100
  %v1105 = vmax.f32 %v1103, %v1097
  %v1106 = vmax.f32 %v1104, %v1101
  %v1107 = vmax.f32 %v1105, %v1098
  %v1108 = vmax.f32 %v1106, %v1102
  %v1109 = vmax.f32 %v585, %v1107
  %v1110 = vmax.f32 %v586, %v1108
  %s1111 = scalar_lea.vmem %s0, 32
  %v1112 = vld [vmem:[%s1111] sm:$0xff]
  %v1113 = vld [vmem:[%s1111 + $0x8] sm:$0xff]
  %v1116 = vcombine.high %v1112, %v1112
  %v1117 = vcombine.high %v1113, %v1113
  %v1118 = vsel %vm53, %v1112, 0
  %v1120 = vsel %vm53, %v1116, 0
  %v1122 = vsel %vm53, %v1113, 0
  %v1124 = vsel %vm53, %v1117, 0
  %1126 = vmatprep.subr.mxu0 %v1120
  %1127 = vmatpush1.msra.mxu0 %v1118
  %1128 = vmatprep.subr.mxu0 0.0
  %1129 = vmatpush1.msra.mxu0 0.0
  %1130 = vmatprep.subr.mxu0 0.0
  %1131 = vmatpush1.msra.mxu0 0.0
  %1132 = vmatprep.subr.mxu0 0.0
  %1133 = vmatpush1.msra.mxu0 0.0
  %1134 = vmatprep.subr.mxu0 0.0
  %1135 = vmatpush1.msra.mxu0 0.0
  %1136 = vmatprep.subr.mxu0 0.0
  %1137 = vmatpush1.msra.mxu0 0.0
  %1138 = vmatprep.subr.mxu0 0.0
  %1139 = vmatpush1.msra.mxu0 0.0
  %1140 = vmatprep.subr.mxu0 0.0
  %1141 = vmatpush1.msra.mxu0 0.0
  %1142 = vmatprep.subr.mxu0 0.0
  %1143 = vmatpush1.msra.mxu0 0.0
  %1144 = vmatprep.subr.mxu0 0.0
  %1145 = vmatpush1.msra.mxu0 0.0
  %1146 = vmatprep.subr.mxu0 0.0
  %1147 = vmatpush1.msra.mxu0 0.0
  %1148 = vmatprep.subr.mxu0 0.0
  %1149 = vmatpush1.msra.mxu0 0.0
  %1150 = vmatprep.subr.mxu0 0.0
  %1151 = vmatpush1.msra.mxu0 0.0
  %1152 = vmatprep.subr.mxu0 0.0
  %1153 = vmatpush1.msra.mxu0 0.0
  %1154 = vmatprep.subr.mxu0 0.0
  %1155 = vmatpush1.msra.mxu0 0.0
  %1156 = vmatprep.subr.mxu0 0.0
  %1157 = vmatpush1.msra.mxu0 0.0
  %1158 = vmatprep.subr.mxu0 0.0
  %1159 = vmatpush1.msra.mxu0 0.0
  %1160 = vmatprep.subr.mxu0 0.0
  %1161 = vmatpush1.msra.mxu0 0.0
  %1162 = vmatprep.subr.mxu0 0.0
  %1163 = vmatpush1.msra.mxu0 0.0
  %1164 = vmatprep.subr.mxu0 0.0
  %1165 = vmatpush1.msra.mxu0 0.0
  %1166 = vmatprep.subr.mxu0 0.0
  %1167 = vmatpush1.msra.mxu0 0.0
  %1168 = vmatprep.subr.mxu0 0.0
  %1169 = vmatpush1.msra.mxu0 0.0
  %1170 = vmatprep.subr.mxu0 0.0
  %1171 = vmatpush1.msra.mxu0 0.0
  %1172 = vmatprep.subr.mxu0 0.0
  %1173 = vmatpush1.msra.mxu0 0.0
  %1174 = vmatprep.subr.mxu0 0.0
  %1175 = vmatpush1.msra.mxu0 0.0
  %1176 = vmatprep.subr.mxu0 0.0
  %1177 = vmatpush1.msra.mxu0 0.0
  %1178 = vmatprep.subr.mxu0 0.0
  %1179 = vmatpush1.msra.mxu0 0.0
  %1180 = vmatprep.subr.mxu0 0.0
  %1181 = vmatpush1.msra.mxu0 0.0
  %1182 = vmatprep.subr.mxu0 0.0
  %1183 = vmatpush1.msra.mxu0 0.0
  %1184 = vmatprep.subr.mxu0 0.0
  %1185 = vmatpush1.msra.mxu0 0.0
  %1186 = vmatprep.subr.mxu0 0.0
  %1187 = vmatpush1.msra.mxu0 0.0
  %1188 = vmatprep.subr.mxu0 0.0
  %1189 = vmatpush1.msra.mxu0 0.0
  %1190 = vmatprep.mubr.f32.mxu0 0.0
  %1191 = vmatmul.mubr.f32.gmra.mrb[0].mxu0 %v48
  %v1192 = vpop.f32.mrb[0].mxu0
  %v1193 = vadd.f32 %v35, %v1192
  %v1194 = vpop.f32.mrb[0].mxu0
  %v1195 = vadd.f32 %v35, %v1194
  %1196 = vmatprep.mubr.f32.mxu0 0.0
  %1197 = vmatmul.mubr.f32.gmra.mrb[0].mxu0 %v51
  %v1198 = vpop.f32.mrb[0].mxu0
  %v1199 = vadd.f32 %v40, %v1198
  %v1200 = vpop.f32.mrb[0].mxu0
  %v1201 = vadd.f32 %v40, %v1200
  %1202 = vdwg.mxu0
  %1203 = vmatprep.subr.mxu0 %v1124
  %1204 = vmatpush1.msra.mxu0 %v1122
  %1205 = vmatprep.subr.mxu0 0.0
  %1206 = vmatpush1.msra.mxu0 0.0
  %1207 = vmatprep.subr.mxu0 0.0
  %1208 = vmatpush1.msra.mxu0 0.0
  %1209 = vmatprep.subr.mxu0 0.0
  %1210 = vmatpush1.msra.mxu0 0.0
  %1211 = vmatprep.subr.mxu0 0.0
  %1212 = vmatpush1.msra.mxu0 0.0
  %1213 = vmatprep.subr.mxu0 0.0
  %1214 = vmatpush1.msra.mxu0 0.0
  %1215 = vmatprep.subr.mxu0 0.0
  %1216 = vmatpush1.msra.mxu0 0.0
  %1217 = vmatprep.subr.mxu0 0.0
  %1218 = vmatpush1.msra.mxu0 0.0
  %1219 = vmatprep.subr.mxu0 0.0
  %1220 = vmatpush1.msra.mxu0 0.0
  %1221 = vmatprep.subr.mxu0 0.0
  %1222 = vmatpush1.msra.mxu0 0.0
  %1223 = vmatprep.subr.mxu0 0.0
  %1224 = vmatpush1.msra.mxu0 0.0
  %1225 = vmatprep.subr.mxu0 0.0
  %1226 = vmatpush1.msra.mxu0 0.0
  %1227 = vmatprep.subr.mxu0 0.0
  %1228 = vmatpush1.msra.mxu0 0.0
  %1229 = vmatprep.subr.mxu0 0.0
  %1230 = vmatpush1.msra.mxu0 0.0
  %1231 = vmatprep.subr.mxu0 0.0
  %1232 = vmatpush1.msra.mxu0 0.0
  %1233 = vmatprep.subr.mxu0 0.0
  %1234 = vmatpush1.msra.mxu0 0.0
  %1235 = vmatprep.subr.mxu0 0.0
  %1236 = vmatpush1.msra.mxu0 0.0
  %1237 = vmatprep.subr.mxu0 0.0
  %1238 = vmatpush1.msra.mxu0 0.0
  %1239 = vmatprep.subr.mxu0 0.0
  %1240 = vmatpush1.msra.mxu0 0.0
  %1241 = vmatprep.subr.mxu0 0.0
  %1242 = vmatpush1.msra.mxu0 0.0
  %1243 = vmatprep.subr.mxu0 0.0
  %1244 = vmatpush1.msra.mxu0 0.0
  %1245 = vmatprep.subr.mxu0 0.0
  %1246 = vmatpush1.msra.mxu0 0.0
  %1247 = vmatprep.subr.mxu0 0.0
  %1248 = vmatpush1.msra.mxu0 0.0
  %1249 = vmatprep.subr.mxu0 0.0
  %1250 = vmatpush1.msra.mxu0 0.0
  %1251 = vmatprep.subr.mxu0 0.0
  %1252 = vmatpush1.msra.mxu0 0.0
  %1253 = vmatprep.subr.mxu0 0.0
  %1254 = vmatpush1.msra.mxu0 0.0
  %1255 = vmatprep.subr.mxu0 0.0
  %1256 = vmatpush1.msra.mxu0 0.0
  %1257 = vmatprep.subr.mxu0 0.0
  %1258 = vmatpush1.msra.mxu0 0.0
  %1259 = vmatprep.subr.mxu0 0.0
  %1260 = vmatpush1.msra.mxu0 0.0
  %1261 = vmatprep.subr.mxu0 0.0
  %1262 = vmatpush1.msra.mxu0 0.0
  %1263 = vmatprep.subr.mxu0 0.0
  %1264 = vmatpush1.msra.mxu0 0.0
  %1265 = vmatprep.subr.mxu0 0.0
  %1266 = vmatpush1.msra.mxu0 0.0
  %1267 = vmatprep.mubr.f32.mxu0 0.0
  %1268 = vmatmul.mubr.f32.gmra.mrb[0].mxu0 %v48
  %v1269 = vpop.f32.mrb[0].mxu0
  %v1270 = vadd.f32 %v35, %v1269
  %v1271 = vpop.f32.mrb[0].mxu0
  %v1272 = vadd.f32 %v35, %v1271
  %1273 = vmatprep.mubr.f32.mxu0 0.0
  %1274 = vmatmul.mubr.f32.gmra.mrb[0].mxu0 %v51
  %v1275 = vpop.f32.mrb[0].mxu0
  %v1276 = vadd.f32 %v40, %v1275
  %v1277 = vpop.f32.mrb[0].mxu0
  %v1278 = vadd.f32 %v40, %v1277
  %1279 = vdwg.mxu0
  %v1280 = vmax.f32 %v1193, 0.0
  %v1281 = vmax.f32 %v1195, 0.0
  %v1282 = vmax.f32 %v1270, 0.0
  %v1283 = vmax.f32 %v1272, 0.0
  %v1284 = vmax.f32 %v1199, 0.0
  %v1285 = vmax.f32 %v1201, 0.0
  %v1286 = vmax.f32 %v1276, 0.0
  %v1287 = vmax.f32 %v1278, 0.0
  %1288 = vmatprep.subr.mxu0 %v1281
  %1289 = vmatpush1.msra.mxu0 %v1280
  %1290 = vmatprep.subr.mxu0 %v1285
  %1291 = vmatpush1.msra.mxu0 %v1284
  %1292 = vmatprep.subr.mxu0 0.0
  %1293 = vmatpush1.msra.mxu0 0.0
  %1294 = vmatprep.subr.mxu0 0.0
  %1295 = vmatpush1.msra.mxu0 0.0
  %1296 = vmatprep.subr.mxu0 0.0
  %1297 = vmatpush1.msra.mxu0 0.0
  %1298 = vmatprep.subr.mxu0 0.0
  %1299 = vmatpush1.msra.mxu0 0.0
  %1300 = vmatprep.subr.mxu0 0.0
  %1301 = vmatpush1.msra.mxu0 0.0
  %1302 = vmatprep.subr.mxu0 0.0
  %1303 = vmatpush1.msra.mxu0 0.0
  %1304 = vmatprep.subr.mxu0 0.0
  %1305 = vmatpush1.msra.mxu0 0.0
  %1306 = vmatprep.subr.mxu0 0.0
  %1307 = vmatpush1.msra.mxu0 0.0
  %1308 = vmatprep.subr.mxu0 0.0
  %1309 = vmatpush1.msra.mxu0 0.0
  %1310 = vmatprep.subr.mxu0 0.0
  %1311 = vmatpush1.msra.mxu0 0.0
  %1312 = vmatprep.subr.mxu0 0.0
  %1313 = vmatpush1.msra.mxu0 0.0
  %1314 = vmatprep.subr.mxu0 0.0
  %1315 = vmatpush1.msra.mxu0 0.0
  %1316 = vmatprep.subr.mxu0 0.0
  %1317 = vmatpush1.msra.mxu0 0.0
  %1318 = vmatprep.subr.mxu0 0.0
  %1319 = vmatpush1.msra.mxu0 0.0
  %1320 = vmatprep.subr.mxu0 0.0
  %1321 = vmatpush1.msra.mxu0 0.0
  %1322 = vmatprep.subr.mxu0 0.0
  %1323 = vmatpush1.msra.mxu0 0.0
  %1324 = vmatprep.subr.mxu0 0.0
  %1325 = vmatpush1.msra.mxu0 0.0
  %1326 = vmatprep.subr.mxu0 0.0
  %1327 = vmatpush1.msra.mxu0 0.0
  %1328 = vmatprep.subr.mxu0 0.0
  %1329 = vmatpush1.msra.mxu0 0.0
  %1330 = vmatprep.subr.mxu0 0.0
  %1331 = vmatpush1.msra.mxu0 0.0
  %1332 = vmatprep.subr.mxu0 0.0
  %1333 = vmatpush1.msra.mxu0 0.0
  %1334 = vmatprep.subr.mxu0 0.0
  %1335 = vmatpush1.msra.mxu0 0.0
  %1336 = vmatprep.subr.mxu0 0.0
  %1337 = vmatpush1.msra.mxu0 0.0
  %1338 = vmatprep.subr.mxu0 0.0
  %1339 = vmatpush1.msra.mxu0 0.0
  %1340 = vmatprep.subr.mxu0 0.0
  %1341 = vmatpush1.msra.mxu0 0.0
  %1342 = vmatprep.subr.mxu0 0.0
  %1343 = vmatpush1.msra.mxu0 0.0
  %1344 = vmatprep.subr.mxu0 0.0
  %1345 = vmatpush1.msra.mxu0 0.0
  %1346 = vmatprep.subr.mxu0 0.0
  %1347 = vmatpush1.msra.mxu0 0.0
  %1348 = vmatprep.subr.mxu0 0.0
  %1349 = vmatpush1.msra.mxu0 0.0
  %1350 = vmatprep.subr.mxu0 0.0
  %1351 = vmatpush1.msra.mxu0 0.0
  %1352 = vmatprep.mubr.f32.mxu0 0.0
  %1353 = vmatmul.mubr.f32.gmra.mrb[0].mxu0 %v240
  %v1354 = vpop.f32.mrb[0].mxu0
  %v1355 = vadd.f32 %v231, %v1354
  %v1356 = vpop.f32.mrb[0].mxu0
  %v1357 = vadd.f32 %v231, %v1356
  %1358 = vmatprep.mubr.f32.mxu0 0.0
  %1359 = vmatmul.mubr.f32.gmra.mrb[0].mxu0 %v243
  %v1360 = vpop.f32.mrb[0].mxu0
  %v1361 = vadd.f32 %v236, %v1360
  %v1362 = vpop.f32.mrb[0].mxu0
  %v1363 = vadd.f32 %v236, %v1362
  %1364 = vdwg.mxu0
  %1365 = vmatprep.subr.mxu0 %v1283
  %1366 = vmatpush1.msra.mxu0 %v1282
  %1367 = vmatprep.subr.mxu0 %v1287
  %1368 = vmatpush1.msra.mxu0 %v1286
  %1369 = vmatprep.subr.mxu0 0.0
  %1370 = vmatpush1.msra.mxu0 0.0
  %1371 = vmatprep.subr.mxu0 0.0
  %1372 = vmatpush1.msra.mxu0 0.0
  %1373 = vmatprep.subr.mxu0 0.0
  %1374 = vmatpush1.msra.mxu0 0.0
  %1375 = vmatprep.subr.mxu0 0.0
  %1376 = vmatpush1.msra.mxu0 0.0
  %1377 = vmatprep.subr.mxu0 0.0
  %1378 = vmatpush1.msra.mxu0 0.0
  %1379 = vmatprep.subr.mxu0 0.0
  %1380 = vmatpush1.msra.mxu0 0.0
  %1381 = vmatprep.subr.mxu0 0.0
  %1382 = vmatpush1.msra.mxu0 0.0
  %1383 = vmatprep.subr.mxu0 0.0
  %1384 = vmatpush1.msra.mxu0 0.0
  %1385 = vmatprep.subr.mxu0 0.0
  %1386 = vmatpush1.msra.mxu0 0.0
  %1387 = vmatprep.subr.mxu0 0.0
  %1388 = vmatpush1.msra.mxu0 0.0
  %1389 = vmatprep.subr.mxu0 0.0
  %1390 = vmatpush1.msra.mxu0 0.0
  %1391 = vmatprep.subr.mxu0 0.0
  %1392 = vmatpush1.msra.mxu0 0.0
  %1393 = vmatprep.subr.mxu0 0.0
  %1394 = vmatpush1.msra.mxu0 0.0
  %1395 = vmatprep.subr.mxu0 0.0
  %1396 = vmatpush1.msra.mxu0 0.0
  %1397 = vmatprep.subr.mxu0 0.0
  %1398 = vmatpush1.msra.mxu0 0.0
  %1399 = vmatprep.subr.mxu0 0.0
  %1400 = vmatpush1.msra.mxu0 0.0
  %1401 = vmatprep.subr.mxu0 0.0
  %1402 = vmatpush1.msra.mxu0 0.0
  %1403 = vmatprep.subr.mxu0 0.0
  %1404 = vmatpush1.msra.mxu0 0.0
  %1405 = vmatprep.subr.mxu0 0.0
  %1406 = vmatpush1.msra.mxu0 0.0
  %1407 = vmatprep.subr.mxu0 0.0
  %1408 = vmatpush1.msra.mxu0 0.0
  %1409 = vmatprep.subr.mxu0 0.0
  %1410 = vmatpush1.msra.mxu0 0.0
  %1411 = vmatprep.subr.mxu0 0.0
  %1412 = vmatpush1.msra.mxu0 0.0
  %1413 = vmatprep.subr.mxu0 0.0
  %1414 = vmatpush1.msra.mxu0 0.0
  %1415 = vmatprep.subr.mxu0 0.0
  %1416 = vmatpush1.msra.mxu0 0.0
  %1417 = vmatprep.subr.mxu0 0.0
  %1418 = vmatpush1.msra.mxu0 0.0
  %1419 = vmatprep.subr.mxu0 0.0
  %1420 = vmatpush1.msra.mxu0 0.0
  %1421 = vmatprep.subr.mxu0 0.0
  %1422 = vmatpush1.msra.mxu0 0.0
  %1423 = vmatprep.subr.mxu0 0.0
  %1424 = vmatpush1.msra.mxu0 0.0
  %1425 = vmatprep.subr.mxu0 0.0
  %1426 = vmatpush1.msra.mxu0 0.0
  %1427 = vmatprep.subr.mxu0 0.0
  %1428 = vmatpush1.msra.mxu0 0.0
  %1429 = vmatprep.mubr.f32.mxu0 0.0
  %1430 = vmatmul.mubr.f32.gmra.mrb[0].mxu0 %v240
  %v1431 = vpop.f32.mrb[0].mxu0
  %v1432 = vadd.f32 %v231, %v1431
  %v1433 = vpop.f32.mrb[0].mxu0
  %v1434 = vadd.f32 %v231, %v1433
  %1435 = vmatprep.mubr.f32.mxu0 0.0
  %1436 = vmatmul.mubr.f32.gmra.mrb[0].mxu0 %v243
  %v1437 = vpop.f32.mrb[0].mxu0
  %v1438 = vadd.f32 %v236, %v1437
  %v1439 = vpop.f32.mrb[0].mxu0
  %v1440 = vadd.f32 %v236, %v1439
  %1441 = vdwg.mxu0
  %v1442 = vmax.f32 %v1355, 0.0
  %v1443 = vmax.f32 %v1357, 0.0
  %v1444 = vmax.f32 %v1432, 0.0
  %v1445 = vmax.f32 %v1434, 0.0
  %v1446 = vmax.f32 %v1361, 0.0
  %v1447 = vmax.f32 %v1363, 0.0
  %v1448 = vmax.f32 %v1438, 0.0
  %v1449 = vmax.f32 %v1440, 0.0
  %1450 = vmatprep.subr.mxu0 %v1443
  %1451 = vmatpush1.msra.mxu0 %v1442
  %1452 = vmatprep.subr.mxu0 %v1447
  %1453 = vmatpush1.msra.mxu0 %v1446
  %1454 = vmatprep.subr.mxu0 0.0
  %1455 = vmatpush1.msra.mxu0 0.0
  %1456 = vmatprep.subr.mxu0 0.0
  %1457 = vmatpush1.msra.mxu0 0.0
  %1458 = vmatprep.subr.mxu0 0.0
  %1459 = vmatpush1.msra.mxu0 0.0
  %1460 = vmatprep.subr.mxu0 0.0
  %1461 = vmatpush1.msra.mxu0 0.0
  %1462 = vmatprep.subr.mxu0 0.0
  %1463 = vmatpush1.msra.mxu0 0.0
  %1464 = vmatprep.subr.mxu0 0.0
  %1465 = vmatpush1.msra.mxu0 0.0
  %1466 = vmatprep.subr.mxu0 0.0
  %1467 = vmatpush1.msra.mxu0 0.0
  %1468 = vmatprep.subr.mxu0 0.0
  %1469 = vmatpush1.msra.mxu0 0.0
  %1470 = vmatprep.subr.mxu0 0.0
  %1471 = vmatpush1.msra.mxu0 0.0
  %1472 = vmatprep.subr.mxu0 0.0
  %1473 = vmatpush1.msra.mxu0 0.0
  %1474 = vmatprep.subr.mxu0 0.0
  %1475 = vmatpush1.msra.mxu0 0.0
  %1476 = vmatprep.subr.mxu0 0.0
  %1477 = vmatpush1.msra.mxu0 0.0
  %1478 = vmatprep.subr.mxu0 0.0
  %1479 = vmatpush1.msra.mxu0 0.0
  %1480 = vmatprep.subr.mxu0 0.0
  %1481 = vmatpush1.msra.mxu0 0.0
  %1482 = vmatprep.subr.mxu0 0.0
  %1483 = vmatpush1.msra.mxu0 0.0
  %1484 = vmatprep.subr.mxu0 0.0
  %1485 = vmatpush1.msra.mxu0 0.0
  %1486 = vmatprep.subr.mxu0 0.0
  %1487 = vmatpush1.msra.mxu0 0.0
  %1488 = vmatprep.subr.mxu0 0.0
  %1489 = vmatpush1.msra.mxu0 0.0
  %1490 = vmatprep.subr.mxu0 0.0
  %1491 = vmatpush1.msra.mxu0 0.0
  %1492 = vmatprep.subr.mxu0 0.0
  %1493 = vmatpush1.msra.mxu0 0.0
  %1494 = vmatprep.subr.mxu0 0.0
  %1495 = vmatpush1.msra.mxu0 0.0
  %1496 = vmatprep.subr.mxu0 0.0
  %1497 = vmatpush1.msra.mxu0 0.0
  %1498 = vmatprep.subr.mxu0 0.0
  %1499 = vmatpush1.msra.mxu0 0.0
  %1500 = vmatprep.subr.mxu0 0.0
  %1501 = vmatpush1.msra.mxu0 0.0
  %1502 = vmatprep.subr.mxu0 0.0
  %1503 = vmatpush1.msra.mxu0 0.0
  %1504 = vmatprep.subr.mxu0 0.0
  %1505 = vmatpush1.msra.mxu0 0.0
  %1506 = vmatprep.subr.mxu0 0.0
  %1507 = vmatpush1.msra.mxu0 0.0
  %1508 = vmatprep.subr.mxu0 0.0
  %1509 = vmatpush1.msra.mxu0 0.0
  %1510 = vmatprep.subr.mxu0 0.0
  %1511 = vmatpush1.msra.mxu0 0.0
  %1512 = vmatprep.subr.mxu0 0.0
  %1513 = vmatpush1.msra.mxu0 0.0
  %1514 = vmatprep.mubr.f32.mxu0 0.0
  %1515 = vmatmul.mubr.f32.gmra.mrb[0].mxu0 %v422
  %v1516 = vpop.f32.mrb[0].mxu0
  %v1517 = vadd.f32 %v414, %v1516
  %v1518 = vpop.f32.mrb[0].mxu0
  %v1519 = vadd.f32 %v414, %v1518
  %1520 = vmatprep.mubr.f32.mxu0 0.0
  %1521 = vmatmul.mubr.f32.gmra.mrb[0].mxu0 %v425
  %v1522 = vpop.f32.mrb[0].mxu0
  %v1523 = vadd.f32 %v419, %v1522
  %v1524 = vpop.f32.mrb[0].mxu0
  %v1525 = vadd.f32 %v419, %v1524
  %1526 = vdwg.mxu0
  %1527 = vmatprep.subr.mxu0 %v1445
  %1528 = vmatpush1.msra.mxu0 %v1444
  %1529 = vmatprep.subr.mxu0 %v1449
  %1530 = vmatpush1.msra.mxu0 %v1448
  %1531 = vmatprep.subr.mxu0 0.0
  %1532 = vmatpush1.msra.mxu0 0.0
  %1533 = vmatprep.subr.mxu0 0.0
  %1534 = vmatpush1.msra.mxu0 0.0
  %1535 = vmatprep.subr.mxu0 0.0
  %1536 = vmatpush1.msra.mxu0 0.0
  %1537 = vmatprep.subr.mxu0 0.0
  %1538 = vmatpush1.msra.mxu0 0.0
  %1539 = vmatprep.subr.mxu0 0.0
  %1540 = vmatpush1.msra.mxu0 0.0
  %1541 = vmatprep.subr.mxu0 0.0
  %1542 = vmatpush1.msra.mxu0 0.0
  %1543 = vmatprep.subr.mxu0 0.0
  %1544 = vmatpush1.msra.mxu0 0.0
  %1545 = vmatprep.subr.mxu0 0.0
  %1546 = vmatpush1.msra.mxu0 0.0
  %1547 = vmatprep.subr.mxu0 0.0
  %1548 = vmatpush1.msra.mxu0 0.0
  %1549 = vmatprep.subr.mxu0 0.0
  %1550 = vmatpush1.msra.mxu0 0.0
  %1551 = vmatprep.subr.mxu0 0.0
  %1552 = vmatpush1.msra.mxu0 0.0
  %1553 = vmatprep.subr.mxu0 0.0
  %1554 = vmatpush1.msra.mxu0 0.0
  %1555 = vmatprep.subr.mxu0 0.0
  %1556 = vmatpush1.msra.mxu0 0.0
  %1557 = vmatprep.subr.mxu0 0.0
  %1558 = vmatpush1.msra.mxu0 0.0
  %1559 = vmatprep.subr.mxu0 0.0
  %1560 = vmatpush1.msra.mxu0 0.0
  %1561 = vmatprep.subr.mxu0 0.0
  %1562 = vmatpush1.msra.mxu0 0.0
  %1563 = vmatprep.subr.mxu0 0.0
  %1564 = vmatpush1.msra.mxu0 0.0
  %1565 = vmatprep.subr.mxu0 0.0
  %1566 = vmatpush1.msra.mxu0 0.0
  %1567 = vmatprep.subr.mxu0 0.0
  %1568 = vmatpush1.msra.mxu0 0.0
  %1569 = vmatprep.subr.mxu0 0.0
  %1570 = vmatpush1.msra.mxu0 0.0
  %1571 = vmatprep.subr.mxu0 0.0
  %1572 = vmatpush1.msra.mxu0 0.0
  %1573 = vmatprep.subr.mxu0 0.0
  %1574 = vmatpush1.msra.mxu0 0.0
  %1575 = vmatprep.subr.mxu0 0.0
  %1576 = vmatpush1.msra.mxu0 0.0
  %1577 = vmatprep.subr.mxu0 0.0
  %1578 = vmatpush1.msra.mxu0 0.0
  %1579 = vmatprep.subr.mxu0 0.0
  %1580 = vmatpush1.msra.mxu0 0.0
  %1581 = vmatprep.subr.mxu0 0.0
  %1582 = vmatpush1.msra.mxu0 0.0
  %1583 = vmatprep.subr.mxu0 0.0
  %1584 = vmatpush1.msra.mxu0 0.0
  %1585 = vmatprep.subr.mxu0 0.0
  %1586 = vmatpush1.msra.mxu0 0.0
  %1587 = vmatprep.subr.mxu0 0.0
  %1588 = vmatpush1.msra.mxu0 0.0
  %1589 = vmatprep.subr.mxu0 0.0
  %1590 = vmatpush1.msra.mxu0 0.0
  %1591 = vmatprep.mubr.f32.mxu0 0.0
  %1592 = vmatmul.mubr.f32.gmra.mrb[0].mxu0 %v422
  %v1593 = vpop.f32.mrb[0].mxu0
  %v1594 = vadd.f32 %v414, %v1593
  %v1595 = vpop.f32.mrb[0].mxu0
  %v1596 = vadd.f32 %v414, %v1595
  %1597 = vmatprep.mubr.f32.mxu0 0.0
  %1598 = vmatmul.mubr.f32.gmra.mrb[0].mxu0 %v425
  %v1599 = vpop.f32.mrb[0].mxu0
  %v1600 = vadd.f32 %v419, %v1599
  %v1601 = vpop.f32.mrb[0].mxu0
  %v1602 = vadd.f32 %v419, %v1601
  %1603 = vdwg.mxu0
  %v1604 = vmax.f32 %v1517, %v1519
  %v1605 = vmax.f32 %v1523, %v1525
  %v1606 = vmax.f32 %v1604, %v1594
  %v1607 = vmax.f32 %v1605, %v1600
  %v1608 = vmax.f32 %v1606, %v1596
  %v1609 = vmax.f32 %v1607, %v1602
  %v1610 = vld [vmem:[%s1111 + $0x10] sm:$0xff]
  %v1611 = vld [vmem:[%s1111 + $0x18] sm:$0xff]
  %v1614 = vcombine.high %v1610, %v1610
  %v1615 = vcombine.high %v1611, %v1611
  %v1616 = vsel %vm53, %v1610, 0
  %v1618 = vsel %vm53, %v1614, 0
  %v1620 = vsel %vm53, %v1611, 0
  %v1622 = vsel %vm53, %v1615, 0
  %1624 = vmatprep.subr.mxu0 %v1618
  %1625 = vmatpush1.msra.mxu0 %v1616
  %1626 = vmatprep.subr.mxu0 0.0
  %1627 = vmatpush1.msra.mxu0 0.0
  %1628 = vmatprep.subr.mxu0 0.0
  %1629 = vmatpush1.msra.mxu0 0.0
  %1630 = vmatprep.subr.mxu0 0.0
  %1631 = vmatpush1.msra.mxu0 0.0
  %1632 = vmatprep.subr.mxu0 0.0
  %1633 = vmatpush1.msra.mxu0 0.0
  %1634 = vmatprep.subr.mxu0 0.0
  %1635 = vmatpush1.msra.mxu0 0.0
  %1636 = vmatprep.subr.mxu0 0.0
  %1637 = vmatpush1.msra.mxu0 0.0
  %1638 = vmatprep.subr.mxu0 0.0
  %1639 = vmatpush1.msra.mxu0 0.0
  %1640 = vmatprep.subr.mxu0 0.0
  %1641 = vmatpush1.msra.mxu0 0.0
  %1642 = vmatprep.subr.mxu0 0.0
  %1643 = vmatpush1.msra.mxu0 0.0
  %1644 = vmatprep.subr.mxu0 0.0
  %1645 = vmatpush1.msra.mxu0 0.0
  %1646 = vmatprep.subr.mxu0 0.0
  %1647 = vmatpush1.msra.mxu0 0.0
  %1648 = vmatprep.subr.mxu0 0.0
  %1649 = vmatpush1.msra.mxu0 0.0
  %1650 = vmatprep.subr.mxu0 0.0
  %1651 = vmatpush1.msra.mxu0 0.0
  %1652 = vmatprep.subr.mxu0 0.0
  %1653 = vmatpush1.msra.mxu0 0.0
  %1654 = vmatprep.subr.mxu0 0.0
  %1655 = vmatpush1.msra.mxu0 0.0
  %1656 = vmatprep.subr.mxu0 0.0
  %1657 = vmatpush1.msra.mxu0 0.0
  %1658 = vmatprep.subr.mxu0 0.0
  %1659 = vmatpush1.msra.mxu0 0.0
  %1660 = vmatprep.subr.mxu0 0.0
  %1661 = vmatpush1.msra.mxu0 0.0
  %1662 = vmatprep.subr.mxu0 0.0
  %1663 = vmatpush1.msra.mxu0 0.0
  %1664 = vmatprep.subr.mxu0 0.0
  %1665 = vmatpush1.msra.mxu0 0.0
  %1666 = vmatprep.subr.mxu0 0.0
  %1667 = vmatpush1.msra.mxu0 0.0
  %1668 = vmatprep.subr.mxu0 0.0
  %1669 = vmatpush1.msra.mxu0 0.0
  %1670 = vmatprep.subr.mxu0 0.0
  %1671 = vmatpush1.msra.mxu0 0.0
  %1672 = vmatprep.subr.mxu0 0.0
  %1673 = vmatpush1.msra.mxu0 0.0
  %1674 = vmatprep.subr.mxu0 0.0
  %1675 = vmatpush1.msra.mxu0 0.0
  %1676 = vmatprep.subr.mxu0 0.0
  %1677 = vmatpush1.msra.mxu0 0.0
  %1678 = vmatprep.subr.mxu0 0.0
  %1679 = vmatpush1.msra.mxu0 0.0
  %1680 = vmatprep.subr.mxu0 0.0
  %1681 = vmatpush1.msra.mxu0 0.0
  %1682 = vmatprep.subr.mxu0 0.0
  %1683 = vmatpush1.msra.mxu0 0.0
  %1684 = vmatprep.subr.mxu0 0.0
  %1685 = vmatpush1.msra.mxu0 0.0
  %1686 = vmatprep.subr.mxu0 0.0
  %1687 = vmatpush1.msra.mxu0 0.0
  %1688 = vmatprep.mubr.f32.mxu0 0.0
  %1689 = vmatmul.mubr.f32.gmra.mrb[0].mxu0 %v48
  %v1690 = vpop.f32.mrb[0].mxu0
  %v1691 = vadd.f32 %v35, %v1690
  %v1692 = vpop.f32.mrb[0].mxu0
  %v1693 = vadd.f32 %v35, %v1692
  %1694 = vmatprep.mubr.f32.mxu0 0.0
  %1695 = vmatmul.mubr.f32.gmra.mrb[0].mxu0 %v51
  %v1696 = vpop.f32.mrb[0].mxu0
  %v1697 = vadd.f32 %v40, %v1696
  %v1698 = vpop.f32.mrb[0].mxu0
  %v1699 = vadd.f32 %v40, %v1698
  %1700 = vdwg.mxu0
  %1701 = vmatprep.subr.mxu0 %v1622
  %1702 = vmatpush1.msra.mxu0 %v1620
  %1703 = vmatprep.subr.mxu0 0.0
  %1704 = vmatpush1.msra.mxu0 0.0
  %1705 = vmatprep.subr.mxu0 0.0
  %1706 = vmatpush1.msra.mxu0 0.0
  %1707 = vmatprep.subr.mxu0 0.0
  %1708 = vmatpush1.msra.mxu0 0.0
  %1709 = vmatprep.subr.mxu0 0.0
  %1710 = vmatpush1.msra.mxu0 0.0
  %1711 = vmatprep.subr.mxu0 0.0
  %1712 = vmatpush1.msra.mxu0 0.0
  %1713 = vmatprep.subr.mxu0 0.0
  %1714 = vmatpush1.msra.mxu0 0.0
  %1715 = vmatprep.subr.mxu0 0.0
  %1716 = vmatpush1.msra.mxu0 0.0
  %1717 = vmatprep.subr.mxu0 0.0
  %1718 = vmatpush1.msra.mxu0 0.0
  %1719 = vmatprep.subr.mxu0 0.0
  %1720 = vmatpush1.msra.mxu0 0.0
  %1721 = vmatprep.subr.mxu0 0.0
  %1722 = vmatpush1.msra.mxu0 0.0
  %1723 = vmatprep.subr.mxu0 0.0
  %1724 = vmatpush1.msra.mxu0 0.0
  %1725 = vmatprep.subr.mxu0 0.0
  %1726 = vmatpush1.msra.mxu0 0.0
  %1727 = vmatprep.subr.mxu0 0.0
  %1728 = vmatpush1.msra.mxu0 0.0
  %1729 = vmatprep.subr.mxu0 0.0
  %1730 = vmatpush1.msra.mxu0 0.0
  %1731 = vmatprep.subr.mxu0 0.0
  %1732 = vmatpush1.msra.mxu0 0.0
  %1733 = vmatprep.subr.mxu0 0.0
  %1734 = vmatpush1.msra.mxu0 0.0
  %1735 = vmatprep.subr.mxu0 0.0
  %1736 = vmatpush1.msra.mxu0 0.0
  %1737 = vmatprep.subr.mxu0 0.0
  %1738 = vmatpush1.msra.mxu0 0.0
  %1739 = vmatprep.subr.mxu0 0.0
  %1740 = vmatpush1.msra.mxu0 0.0
  %1741 = vmatprep.subr.mxu0 0.0
  %1742 = vmatpush1.msra.mxu0 0.0
  %1743 = vmatprep.subr.mxu0 0.0
  %1744 = vmatpush1.msra.mxu0 0.0
  %1745 = vmatprep.subr.mxu0 0.0
  %1746 = vmatpush1.msra.mxu0 0.0
  %1747 = vmatprep.subr.mxu0 0.0
  %1748 = vmatpush1.msra.mxu0 0.0
  %1749 = vmatprep.subr.mxu0 0.0
  %1750 = vmatpush1.msra.mxu0 0.0
  %1751 = vmatprep.subr.mxu0 0.0
  %1752 = vmatpush1.msra.mxu0 0.0
  %1753 = vmatprep.subr.mxu0 0.0
  %1754 = vmatpush1.msra.mxu0 0.0
  %1755 = vmatprep.subr.mxu0 0.0
  %1756 = vmatpush1.msra.mxu0 0.0
  %1757 = vmatprep.subr.mxu0 0.0
  %1758 = vmatpush1.msra.mxu0 0.0
  %1759 = vmatprep.subr.mxu0 0.0
  %1760 = vmatpush1.msra.mxu0 0.0
  %1761 = vmatprep.subr.mxu0 0.0
  %1762 = vmatpush1.msra.mxu0 0.0
  %1763 = vmatprep.subr.mxu0 0.0
  %1764 = vmatpush1.msra.mxu0 0.0
  %1765 = vmatprep.mubr.f32.mxu0 0.0
  %1766 = vmatmul.mubr.f32.gmra.mrb[0].mxu0 %v48
  %v1767 = vpop.f32.mrb[0].mxu0
  %v1768 = vadd.f32 %v35, %v1767
  %v1769 = vpop.f32.mrb[0].mxu0
  %v1770 = vadd.f32 %v35, %v1769
  %1771 = vmatprep.mubr.f32.mxu0 0.0
  %1772 = vmatmul.mubr.f32.gmra.mrb[0].mxu0 %v51
  %v1773 = vpop.f32.mrb[0].mxu0
  %v1774 = vadd.f32 %v40, %v1773
  %v1775 = vpop.f32.mrb[0].mxu0
  %v1776 = vadd.f32 %v40, %v1775
  %1777 = vdwg.mxu0
  %v1778 = vmax.f32 %v1691, 0.0
  %v1779 = vmax.f32 %v1693, 0.0
  %v1780 = vmax.f32 %v1768, 0.0
  %v1781 = vmax.f32 %v1770, 0.0
  %v1782 = vmax.f32 %v1697, 0.0
  %v1783 = vmax.f32 %v1699, 0.0
  %v1784 = vmax.f32 %v1774, 0.0
  %v1785 = vmax.f32 %v1776, 0.0
  %1786 = vmatprep.subr.mxu0 %v1779
  %1787 = vmatpush1.msra.mxu0 %v1778
  %1788 = vmatprep.subr.mxu0 %v1783
  %1789 = vmatpush1.msra.mxu0 %v1782
  %1790 = vmatprep.subr.mxu0 0.0
  %1791 = vmatpush1.msra.mxu0 0.0
  %1792 = vmatprep.subr.mxu0 0.0
  %1793 = vmatpush1.msra.mxu0 0.0
  %1794 = vmatprep.subr.mxu0 0.0
  %1795 = vmatpush1.msra.mxu0 0.0
  %1796 = vmatprep.subr.mxu0 0.0
  %1797 = vmatpush1.msra.mxu0 0.0
  %1798 = vmatprep.subr.mxu0 0.0
  %1799 = vmatpush1.msra.mxu0 0.0
  %1800 = vmatprep.subr.mxu0 0.0
  %1801 = vmatpush1.msra.mxu0 0.0
  %1802 = vmatprep.subr.mxu0 0.0
  %1803 = vmatpush1.msra.mxu0 0.0
  %1804 = vmatprep.subr.mxu0 0.0
  %1805 = vmatpush1.msra.mxu0 0.0
  %1806 = vmatprep.subr.mxu0 0.0
  %1807 = vmatpush1.msra.mxu0 0.0
  %1808 = vmatprep.subr.mxu0 0.0
  %1809 = vmatpush1.msra.mxu0 0.0
  %1810 = vmatprep.subr.mxu0 0.0
  %1811 = vmatpush1.msra.mxu0 0.0
  %1812 = vmatprep.subr.mxu0 0.0
  %1813 = vmatpush1.msra.mxu0 0.0
  %1814 = vmatprep.subr.mxu0 0.0
  %1815 = vmatpush1.msra.mxu0 0.0
  %1816 = vmatprep.subr.mxu0 0.0
  %1817 = vmatpush1.msra.mxu0 0.0
  %1818 = vmatprep.subr.mxu0 0.0
  %1819 = vmatpush1.msra.mxu0 0.0
  %1820 = vmatprep.subr.mxu0 0.0
  %1821 = vmatpush1.msra.mxu0 0.0
  %1822 = vmatprep.subr.mxu0 0.0
  %1823 = vmatpush1.msra.mxu0 0.0
  %1824 = vmatprep.subr.mxu0 0.0
  %1825 = vmatpush1.msra.mxu0 0.0
  %1826 = vmatprep.subr.mxu0 0.0
  %1827 = vmatpush1.msra.mxu0 0.0
  %1828 = vmatprep.subr.mxu0 0.0
  %1829 = vmatpush1.msra.mxu0 0.0
  %1830 = vmatprep.subr.mxu0 0.0
  %1831 = vmatpush1.msra.mxu0 0.0
  %1832 = vmatprep.subr.mxu0 0.0
  %1833 = vmatpush1.msra.mxu0 0.0
  %1834 = vmatprep.subr.mxu0 0.0
  %1835 = vmatpush1.msra.mxu0 0.0
  %1836 = vmatprep.subr.mxu0 0.0
  %1837 = vmatpush1.msra.mxu0 0.0
  %1838 = vmatprep.subr.mxu0 0.0
  %1839 = vmatpush1.msra.mxu0 0.0
  %1840 = vmatprep.subr.mxu0 0.0
  %1841 = vmatpush1.msra.mxu0 0.0
  %1842 = vmatprep.subr.mxu0 0.0
  %1843 = vmatpush1.msra.mxu0 0.0
  %1844 = vmatprep.subr.mxu0 0.0
  %1845 = vmatpush1.msra.mxu0 0.0
  %1846 = vmatprep.subr.mxu0 0.0
  %1847 = vmatpush1.msra.mxu0 0.0
  %1848 = vmatprep.subr.mxu0 0.0
  %1849 = vmatpush1.msra.mxu0 0.0
  %1850 = vmatprep.mubr.f32.mxu0 0.0
  %1851 = vmatmul.mubr.f32.gmra.mrb[0].mxu0 %v240
  %v1852 = vpop.f32.mrb[0].mxu0
  %v1853 = vadd.f32 %v231, %v1852
  %v1854 = vpop.f32.mrb[0].mxu0
  %v1855 = vadd.f32 %v231, %v1854
  %1856 = vmatprep.mubr.f32.mxu0 0.0
  %1857 = vmatmul.mubr.f32.gmra.mrb[0].mxu0 %v243
  %v1858 = vpop.f32.mrb[0].mxu0
  %v1859 = vadd.f32 %v236, %v1858
  %v1860 = vpop.f32.mrb[0].mxu0
  %v1861 = vadd.f32 %v236, %v1860
  %1862 = vdwg.mxu0
  %1863 = vmatprep.subr.mxu0 %v1781
  %1864 = vmatpush1.msra.mxu0 %v1780
  %1865 = vmatprep.subr.mxu0 %v1785
  %1866 = vmatpush1.msra.mxu0 %v1784
  %1867 = vmatprep.subr.mxu0 0.0
  %1868 = vmatpush1.msra.mxu0 0.0
  %1869 = vmatprep.subr.mxu0 0.0
  %1870 = vmatpush1.msra.mxu0 0.0
  %1871 = vmatprep.subr.mxu0 0.0
  %1872 = vmatpush1.msra.mxu0 0.0
  %1873 = vmatprep.subr.mxu0 0.0
  %1874 = vmatpush1.msra.mxu0 0.0
  %1875 = vmatprep.subr.mxu0 0.0
  %1876 = vmatpush1.msra.mxu0 0.0
  %1877 = vmatprep.subr.mxu0 0.0
  %1878 = vmatpush1.msra.mxu0 0.0
  %1879 = vmatprep.subr.mxu0 0.0
  %1880 = vmatpush1.msra.mxu0 0.0
  %1881 = vmatprep.subr.mxu0 0.0
  %1882 = vmatpush1.msra.mxu0 0.0
  %1883 = vmatprep.subr.mxu0 0.0
  %1884 = vmatpush1.msra.mxu0 0.0
  %1885 = vmatprep.subr.mxu0 0.0
  %1886 = vmatpush1.msra.mxu0 0.0
  %1887 = vmatprep.subr.mxu0 0.0
  %1888 = vmatpush1.msra.mxu0 0.0
  %1889 = vmatprep.subr.mxu0 0.0
  %1890 = vmatpush1.msra.mxu0 0.0
  %1891 = vmatprep.subr.mxu0 0.0
  %1892 = vmatpush1.msra.mxu0 0.0
  %1893 = vmatprep.subr.mxu0 0.0
  %1894 = vmatpush1.msra.mxu0 0.0
  %1895 = vmatprep.subr.mxu0 0.0
  %1896 = vmatpush1.msra.mxu0 0.0
  %1897 = vmatprep.subr.mxu0 0.0
  %1898 = vmatpush1.msra.mxu0 0.0
  %1899 = vmatprep.subr.mxu0 0.0
  %1900 = vmatpush1.msra.mxu0 0.0
  %1901 = vmatprep.subr.mxu0 0.0
  %1902 = vmatpush1.msra.mxu0 0.0
  %1903 = vmatprep.subr.mxu0 0.0
  %1904 = vmatpush1.msra.mxu0 0.0
  %1905 = vmatprep.subr.mxu0 0.0
  %1906 = vmatpush1.msra.mxu0 0.0
  %1907 = vmatprep.subr.mxu0 0.0
  %1908 = vmatpush1.msra.mxu0 0.0
  %1909 = vmatprep.subr.mxu0 0.0
  %1910 = vmatpush1.msra.mxu0 0.0
  %1911 = vmatprep.subr.mxu0 0.0
  %1912 = vmatpush1.msra.mxu0 0.0
  %1913 = vmatprep.subr.mxu0 0.0
  %1914 = vmatpush1.msra.mxu0 0.0
  %1915 = vmatprep.subr.mxu0 0.0
  %1916 = vmatpush1.msra.mxu0 0.0
  %1917 = vmatprep.subr.mxu0 0.0
  %1918 = vmatpush1.msra.mxu0 0.0
  %1919 = vmatprep.subr.mxu0 0.0
  %1920 = vmatpush1.msra.mxu0 0.0
  %1921 = vmatprep.subr.mxu0 0.0
  %1922 = vmatpush1.msra.mxu0 0.0
  %1923 = vmatprep.subr.mxu0 0.0
  %1924 = vmatpush1.msra.mxu0 0.0
  %1925 = vmatprep.subr.mxu0 0.0
  %1926 = vmatpush1.msra.mxu0 0.0
  %1927 = vmatprep.mubr.f32.mxu0 0.0
  %1928 = vmatmul.mubr.f32.gmra.mrb[0].mxu0 %v240
  %v1929 = vpop.f32.mrb[0].mxu0
  %v1930 = vadd.f32 %v231, %v1929
  %v1931 = vpop.f32.mrb[0].mxu0
  %v1932 = vadd.f32 %v231, %v1931
  %1933 = vmatprep.mubr.f32.mxu0 0.0
  %1934 = vmatmul.mubr.f32.gmra.mrb[0].mxu0 %v243
  %v1935 = vpop.f32.mrb[0].mxu0
  %v1936 = vadd.f32 %v236, %v1935
  %v1937 = vpop.f32.mrb[0].mxu0
  %v1938 = vadd.f32 %v236, %v1937
  %1939 = vdwg.mxu0
  %v1940 = vmax.f32 %v1853, 0.0
  %v1941 = vmax.f32 %v1855, 0.0
  %v1942 = vmax.f32 %v1930, 0.0
  %v1943 = vmax.f32 %v1932, 0.0
  %v1944 = vmax.f32 %v1859, 0.0
  %v1945 = vmax.f32 %v1861, 0.0
  %v1946 = vmax.f32 %v1936, 0.0
  %v1947 = vmax.f32 %v1938, 0.0
  %1948 = vmatprep.subr.mxu0 %v1941
  %1949 = vmatpush1.msra.mxu0 %v1940
  %1950 = vmatprep.subr.mxu0 %v1945
  %1951 = vmatpush1.msra.mxu0 %v1944
  %1952 = vmatprep.subr.mxu0 0.0
  %1953 = vmatpush1.msra.mxu0 0.0
  %1954 = vmatprep.subr.mxu0 0.0
  %1955 = vmatpush1.msra.mxu0 0.0
  %1956 = vmatprep.subr.mxu0 0.0
  %1957 = vmatpush1.msra.mxu0 0.0
  %1958 = vmatprep.subr.mxu0 0.0
  %1959 = vmatpush1.msra.mxu0 0.0
  %1960 = vmatprep.subr.mxu0 0.0
  %1961 = vmatpush1.msra.mxu0 0.0
  %1962 = vmatprep.subr.mxu0 0.0
  %1963 = vmatpush1.msra.mxu0 0.0
  %1964 = vmatprep.subr.mxu0 0.0
  %1965 = vmatpush1.msra.mxu0 0.0
  %1966 = vmatprep.subr.mxu0 0.0
  %1967 = vmatpush1.msra.mxu0 0.0
  %1968 = vmatprep.subr.mxu0 0.0
  %1969 = vmatpush1.msra.mxu0 0.0
  %1970 = vmatprep.subr.mxu0 0.0
  %1971 = vmatpush1.msra.mxu0 0.0
  %1972 = vmatprep.subr.mxu0 0.0
  %1973 = vmatpush1.msra.mxu0 0.0
  %1974 = vmatprep.subr.mxu0 0.0
  %1975 = vmatpush1.msra.mxu0 0.0
  %1976 = vmatprep.subr.mxu0 0.0
  %1977 = vmatpush1.msra.mxu0 0.0
  %1978 = vmatprep.subr.mxu0 0.0
  %1979 = vmatpush1.msra.mxu0 0.0
  %1980 = vmatprep.subr.mxu0 0.0
  %1981 = vmatpush1.msra.mxu0 0.0
  %1982 = vmatprep.subr.mxu0 0.0
  %1983 = vmatpush1.msra.mxu0 0.0
  %1984 = vmatprep.subr.mxu0 0.0
  %1985 = vmatpush1.msra.mxu0 0.0
  %1986 = vmatprep.subr.mxu0 0.0
  %1987 = vmatpush1.msra.mxu0 0.0
  %1988 = vmatprep.subr.mxu0 0.0
  %1989 = vmatpush1.msra.mxu0 0.0
  %1990 = vmatprep.subr.mxu0 0.0
  %1991 = vmatpush1.msra.mxu0 0.0
  %1992 = vmatprep.subr.mxu0 0.0
  %1993 = vmatpush1.msra.mxu0 0.0
  %1994 = vmatprep.subr.mxu0 0.0
  %1995 = vmatpush1.msra.mxu0 0.0
  %1996 = vmatprep.subr.mxu0 0.0
  %1997 = vmatpush1.msra.mxu0 0.0
  %1998 = vmatprep.subr.mxu0 0.0
  %1999 = vmatpush1.msra.mxu0 0.0
  %2000 = vmatprep.subr.mxu0 0.0
  %2001 = vmatpush1.msra.mxu0 0.0
  %2002 = vmatprep.subr.mxu0 0.0
  %2003 = vmatpush1.msra.mxu0 0.0
  %2004 = vmatprep.subr.mxu0 0.0
  %2005 = vmatpush1.msra.mxu0 0.0
  %2006 = vmatprep.subr.mxu0 0.0
  %2007 = vmatpush1.msra.mxu0 0.0
  %2008 = vmatprep.subr.mxu0 0.0
  %2009 = vmatpush1.msra.mxu0 0.0
  %2010 = vmatprep.subr.mxu0 0.0
  %2011 = vmatpush1.msra.mxu0 0.0
  %2012 = vmatprep.mubr.f32.mxu0 0.0
  %2013 = vmatmul.mubr.f32.gmra.mrb[0].mxu0 %v422
  %v2014 = vpop.f32.mrb[0].mxu0
  %v2015 = vadd.f32 %v414, %v2014
  %v2016 = vpop.f32.mrb[0].mxu0
  %v2017 = vadd.f32 %v414, %v2016
  %2018 = vmatprep.mubr.f32.mxu0 0.0
  %2019 = vmatmul.mubr.f32.gmra.mrb[0].mxu0 %v425
  %v2020 = vpop.f32.mrb[0].mxu0
  %v2021 = vadd.f32 %v419, %v2020
  %v2022 = vpop.f32.mrb[0].mxu0
  %v2023 = vadd.f32 %v419, %v2022
  %2024 = vdwg.mxu0
  %2025 = vmatprep.subr.mxu0 %v1943
  %2026 = vmatpush1.msra.mxu0 %v1942
  %2027 = vmatprep.subr.mxu0 %v1947
  %2028 = vmatpush1.msra.mxu0 %v1946
  %2029 = vmatprep.subr.mxu0 0.0
  %2030 = vmatpush1.msra.mxu0 0.0
  %2031 = vmatprep.subr.mxu0 0.0
  %2032 = vmatpush1.msra.mxu0 0.0
  %2033 = vmatprep.subr.mxu0 0.0
  %2034 = vmatpush1.msra.mxu0 0.0
  %2035 = vmatprep.subr.mxu0 0.0
  %2036 = vmatpush1.msra.mxu0 0.0
  %2037 = vmatprep.subr.mxu0 0.0
  %2038 = vmatpush1.msra.mxu0 0.0
  %2039 = vmatprep.subr.mxu0 0.0
  %2040 = vmatpush1.msra.mxu0 0.0
  %2041 = vmatprep.subr.mxu0 0.0
  %2042 = vmatpush1.msra.mxu0 0.0
  %2043 = vmatprep.subr.mxu0 0.0
  %2044 = vmatpush1.msra.mxu0 0.0
  %2045 = vmatprep.subr.mxu0 0.0
  %2046 = vmatpush1.msra.mxu0 0.0
  %2047 = vmatprep.subr.mxu0 0.0
  %2048 = vmatpush1.msra.mxu0 0.0
  %2049 = vmatprep.subr.mxu0 0.0
  %2050 = vmatpush1.msra.mxu0 0.0
  %2051 = vmatprep.subr.mxu0 0.0
  %2052 = vmatpush1.msra.mxu0 0.0
  %2053 = vmatprep.subr.mxu0 0.0
  %2054 = vmatpush1.msra.mxu0 0.0
  %2055 = vmatprep.subr.mxu0 0.0
  %2056 = vmatpush1.msra.mxu0 0.0
  %2057 = vmatprep.subr.mxu0 0.0
  %2058 = vmatpush1.msra.mxu0 0.0
  %2059 = vmatprep.subr.mxu0 0.0
  %2060 = vmatpush1.msra.mxu0 0.0
  %2061 = vmatprep.subr.mxu0 0.0
  %2062 = vmatpush1.msra.mxu0 0.0
  %2063 = vmatprep.subr.mxu0 0.0
  %2064 = vmatpush1.msra.mxu0 0.0
  %2065 = vmatprep.subr.mxu0 0.0
  %2066 = vmatpush1.msra.mxu0 0.0
  %2067 = vmatprep.subr.mxu0 0.0
  %2068 = vmatpush1.msra.mxu0 0.0
  %2069 = vmatprep.subr.mxu0 0.0
  %2070 = vmatpush1.msra.mxu0 0.0
  %2071 = vmatprep.subr.mxu0 0.0
  %2072 = vmatpush1.msra.mxu0 0.0
  %2073 = vmatprep.subr.mxu0 0.0
  %2074 = vmatpush1.msra.mxu0 0.0
  %2075 = vmatprep.subr.mxu0 0.0
  %2076 = vmatpush1.msra.mxu0 0.0
  %2077 = vmatprep.subr.mxu0 0.0
  %2078 = vmatpush1.msra.mxu0 0.0
  %2079 = vmatprep.subr.mxu0 0.0
  %2080 = vmatpush1.msra.mxu0 0.0
  %2081 = vmatprep.subr.mxu0 0.0
  %2082 = vmatpush1.msra.mxu0 0.0
  %2083 = vmatprep.subr.mxu0 0.0
  %2084 = vmatpush1.msra.mxu0 0.0
  %2085 = vmatprep.subr.mxu0 0.0
  %2086 = vmatpush1.msra.mxu0 0.0
  %2087 = vmatprep.subr.mxu0 0.0
  %2088 = vmatpush1.msra.mxu0 0.0
  %2089 = vmatprep.mubr.f32.mxu0 0.0
  %2090 = vmatmul.mubr.f32.gmra.mrb[0].mxu0 %v422
  %v2091 = vpop.f32.mrb[0].mxu0
  %v2092 = vadd.f32 %v414, %v2091
  %v2093 = vpop.f32.mrb[0].mxu0
  %v2094 = vadd.f32 %v414, %v2093
  %2095 = vmatprep.mubr.f32.mxu0 0.0
  %2096 = vmatmul.mubr.f32.gmra.mrb[0].mxu0 %v425
  %v2097 = vpop.f32.mrb[0].mxu0
  %v2098 = vadd.f32 %v419, %v2097
  %v2099 = vpop.f32.mrb[0].mxu0
  %v2100 = vadd.f32 %v419, %v2099
  %2101 = vdwg.mxu0
  %v2102 = vsel %vm1091, %v2015, -inf
  %v2103 = vsel %vm1092, %v2017, -inf
  %v2104 = vsel %vm1093, %v2092, -inf
  %v2105 = vsel %vm1094, %v2094, -inf
  %v2106 = vsel %vm1091, %v2021, -inf
  %v2107 = vsel %vm1092, %v2023, -inf
  %v2108 = vsel %vm1093, %v2098, -inf
  %v2109 = vsel %vm1094, %v2100, -inf
  %v2110 = vmax.f32 %v2102, %v2103
  %v2111 = vmax.f32 %v2106, %v2107
  %v2112 = vmax.f32 %v2110, %v2104
  %v2113 = vmax.f32 %v2111, %v2108
  %v2114 = vmax.f32 %v2112, %v2105
  %v2115 = vmax.f32 %v2113, %v2109
  %v2116 = vmax.f32 %v1608, %v2114
  %v2117 = vmax.f32 %v1609, %v2115
  %p2118 = scmp.eq.s32.totalorder 0, 0
  // Predicated region
  $region30: #{sim_pointnet_feat.1} parent=0 // pred_check
    %p2119 = pneg %p2118
  $region31: #{sim_pointnet_feat.1} parent=0 // pred_check_branch
    %2121 = sbr.rel (%p2119) target = $region33
  $region32: #{sim_pointnet_feat.1} parent=0 // pred_region
    %2122 = vst [vmem:[%s7] sm:$0xff] %v1109
    %2123 = vst [vmem:[%s7 + $0x8] sm:$0xff] %v1110
    %s2124 = scalar_lea.vmem %s7, 16
    %2125 = vst [vmem:[%s2124] sm:$0xff] %v2116
    %2126 = vst [vmem:[%s2124 + $0x8] sm:$0xff] %v2117
  $region33: #{sim_pointnet_feat.1} parent=0 // pred_fallthru
    _
  %p2127 = scmp.ne.s32.totalorder 0, 0
  // Predicated region
  $region34: #{sim_pointnet_feat.1} parent=0 // pred_check
    %p2128 = pneg %p2127
  $region35: #{sim_pointnet_feat.1} parent=0 // pred_check_branch
    %2130 = sbr.rel (%p2128) target = $region37
  $region36: #{sim_pointnet_feat.1} parent=0 // pred_region
    %v2131 = vld [vmem:[%s7] sm:$0xff]
    %v2132 = vld [vmem:[%s7 + $0x8] sm:$0xff]
    %v2133 = vmax.f32 %v2131, %v1109
    %v2134 = vmax.f32 %v2132, %v1110
    %2135 = vst [vmem:[%s7] sm:$0xff] %v2133
    %2136 = vst [vmem:[%s7 + $0x8] sm:$0xff] %v2134
    %s2137 = scalar_lea.vmem %s7, 16
    %v2138 = vld [vmem:[%s2137] sm:$0xff]
    %v2139 = vld [vmem:[%s2137 + $0x8] sm:$0xff]
    %v2140 = vmax.f32 %v2138, %v2116
    %v2141 = vmax.f32 %v2139, %v2117
    %2142 = vst [vmem:[%s2137] sm:$0xff] %v2140
    %2143 = vst [vmem:[%s2137 + $0x8] sm:$0xff] %v2141
  $region37: #{sim_pointnet_feat.1} parent=0 // pred_fallthru
    _
  // Predicated region
  $region38: #{sim_pointnet_feat.1} parent=0 // pred_check
    _
  $region39: #{sim_pointnet_feat.1} parent=0 // pred_check_branch
    %2145 = sbr.rel (0) target = $region41
  $region40: #{sim_pointnet_feat.1} parent=0 // pred_region
    _
  $region41: #{sim_pointnet_feat.1} parent=0 // pred_fallthru
    _
  // Predicated region
  $region42: #{sim_pointnet_feat.1} parent=0 // pred_check
    _
  $region43: #{sim_pointnet_feat.1} parent=0 // pred_check_branch
    %2147 = sbr.rel (0) target = $region45
  $region44: #{sim_pointnet_feat.1} parent=0 // pred_region
    _
  $region45: #{sim_pointnet_feat.1} parent=0 // pred_fallthru
    _

</llo_original>
